<compile_context>
chip_gen: v7x
topology: tpu7x:2x2x1
jax: 0.10.0
libtpu: 0.0.40
codegen_flags: <defaults>
</compile_context>

<pallas_src>
import functools

import jax
import jax.numpy as jnp
import numpy as np
from jax import lax
from jax.experimental import pallas as pl
from jax.experimental.pallas import tpu as pltpu


def _estimator_kernel(rx_ref, mask_ref, w1_ref, b1_ref, w2_ref, b2_ref,
                      ch_est_ref, comp_ref, *, n_subc, tb):
    """Processes TB batch elements per grid step.

    rx_ref    : (TB, 2, S, N) f32   received signal, channels-first
    mask_ref  : (1, N)        f32   1.0 at DMRS subcarriers, 0.0 elsewhere
    w1_ref    : (N, H) bf16, b1_ref: (1, H) f32
    w2_ref    : (H, N) bf16, b2_ref: (1, N) f32
    ch_est_ref: (1, 2, TB, N) f32   channel estimate (dense slab layout)
    comp_ref  : (TB, 2, S, N) f32   equalized rx signal
    """
    mask = mask_ref[...]                                     # (1, N)

    # DMRS symbol (symbol 0) read straight from the ref: no (TB,S,N) temporaries.
    re0 = rx_ref[:, 0, 0, :] * mask                          # (TB, N)
    im0 = rx_ref[:, 1, 0, :] * mask                          # (TB, N)

    # Per-batch-element power normalization (row-wise).
    ms = jnp.sum(re0 * re0 + im0 * im0, axis=-1, keepdims=True) \
        * jnp.float32(1.0 / n_subc)                          # (TB, 1)
    inv_std = lax.rsqrt(ms)                                  # EUP rsqrt
    ch_std = ms * inv_std                                    # == sqrt(ms), one VPU mul

    # --- surrogate for self.ch_tf(ch_in): 2-layer MLP as ONE (2*TB, N) MXU matmul.
    # Weights arrive bf16 (half the DMA / VMEM); activations stay f32.
    x = jnp.concatenate([re0 * inv_std, im0 * inv_std], axis=0)         # (2TB, N)
    h = jnp.dot(x, w1_ref[...].astype(jnp.float32),
                preferred_element_type=jnp.float32) + b1_ref[...]
    h = jnp.maximum(h, 0.0)
    y = jnp.dot(h, w2_ref[...].astype(jnp.float32),
                preferred_element_type=jnp.float32) + b2_ref[...]
    # -------------------------------------------------------------------------

    y_re = y[:tb, :] * ch_std                                # de-normalize (TB, N)
    y_im = y[tb:, :] * ch_std

    # Dense lane-aligned slab write of the channel estimate.
    ch_est_ref[0, 0, :, :] = y_re
    ch_est_ref[0, 1, :, :] = y_im

    # MMSE-style equalization: fold 1/denom into the (TB, N) taps ONCE.
    d = y_re * y_re + y_im * y_im
    inv_d = pl.reciprocal(d, approx=True)                    # EUP
    inv_d = inv_d * (2.0 - d * inv_d)                        # 1 Newton step -> ~f32 exact
    cre = (y_re * inv_d)[:, None, :]                         # (TB, 1, N)
    cim = (y_im * inv_d)[:, None, :]

    # Full-block rx reads kept inline in the equalization writes.
    comp_ref[:, 0, :, :] = rx_ref[:, 0, :, :] * cre + rx_ref[:, 1, :, :] * cim
    comp_ref[:, 1, :, :] = rx_ref[:, 1, :, :] * cre - rx_ref[:, 0, :, :] * cim


def _tpu_vmem_and_cores():
    """Best-effort chip query; conservative fallbacks keep any TPU safe."""
    vmem_cap = 64 << 20                     # conservative default (v7x per-TC VMEM)
    try:
        vmem_cap = int(pltpu.get_tpu_info().vmem_capacity_bytes)
    except Exception:
        pass
    num_cores = 1
    try:
        kind = jax.devices()[0].device_kind.lower()
        # Chips whose TensorCores split a grid under dimension_semantics="parallel".
        if ("v7" in kind) or ("v4" in kind) or ("v5p" in kind):
            num_cores = 2
    except Exception:
        pass
    return vmem_cap, num_cores


def _choose_tb(batch, n_symb, n_subc, hidden, vmem_budget, num_cores):
    """Largest divisor of `batch` whose double-buffered footprint fits the VMEM
    budget.  On 2-TensorCore chips prefer a TB that keeps nb = B/TB even so the
    grid splits evenly across cores; on single-core chips take the biggest TB
    (fewer, larger steps => fewer ~0.35 us per-step overheads, longer DMAs)."""
    per_tb = 2 * (2 * (2 * n_symb * n_subc * 4)       # rx block + comp block (f32)
                  + 2 * n_subc * 4)                   # ch_est block
    fixed = 2 * (2 * n_subc * hidden * 2              # bf16 w1 + w2 (worst case 2-buf)
                 + (hidden + 3 * n_subc) * 4)         # f32 b1, b2, mask
    fixed += 8 << 20                                  # compiler-internal headroom
    max_tb = int(max(1, min(batch, (vmem_budget - fixed) // per_tb)))
    divisors = [d for d in range(1, batch + 1) if batch % d == 0 and d <= max_tb]
    best = max(divisors)
    if num_cores >= 2 and batch >= 2:
        even_nb = [d for d in divisors if (batch // d) % 2 == 0]
        if even_nb:
            best = max(even_nb)
    return best


def estimator_v3_forward_chfirst(rx_chfirst, dmrs_mask, w1, b1, w2, b2, *, tb=None):
    """Fast path: rx_chfirst is already channels-first (B, 2, n_symb, n_subc)."""
    B, nch, n_symb, n_subc = rx_chfirst.shape
    assert nch == 2
    hidden = w1.shape[1]

    vmem_cap, num_cores = _tpu_vmem_and_cores()
    vmem_budget = (vmem_cap * 3) // 4          # ~48 MiB on 64 MiB v7x, ~96 MiB on 128 MiB v5e/v6e
    if tb is None:
        tb = _choose_tb(B, n_symb, n_subc, hidden, vmem_budget, num_cores)
    assert B % tb == 0, "batch must be divisible by the per-step tile TB"
    nb = B // tb

    rx_chfirst = rx_chfirst.astype(jnp.float32)
    mask2d = dmrs_mask.reshape(1, n_subc).astype(jnp.float32)
    w1_bf = w1.astype(jnp.bfloat16)            # bf16 storage: halves weight DMA/VMEM
    w2_bf = w2.astype(jnp.bfloat16)
    b1_2d = b1.reshape(1, hidden).astype(jnp.float32)
    b2_2d = b2.reshape(1, n_subc).astype(jnp.float32)

    # Scoped-VMEM budget from the actual block footprint (double-buffered rx/comp/
    # ch_est blocks + weights + headroom), capped by the chip-derived budget.
    rx_blk = tb * 2 * n_symb * n_subc * 4
    ch_blk = tb * 2 * n_subc * 4
    w_bytes = 2 * n_subc * hidden * 2 + (hidden + 3 * n_subc) * 4
    needed = 2 * (2 * rx_blk + ch_blk) + 2 * w_bytes + (4 << 20)
    vmem_limit = int(max(min(vmem_budget, max(needed, 16 << 20)), needed))

    kernel = functools.partial(_estimator_kernel, n_subc=n_subc, tb=tb)
    out_shape = (jax.ShapeDtypeStruct((nb, 2, tb, n_subc), jnp.float32),
                 jax.ShapeDtypeStruct((B, 2, n_symb, n_subc), jnp.float32))

    def _build(single_buffer_invariants):
        def inv_spec(shape):
            # Grid-invariant operands: single-buffer to save VMEM and avoid
            # useless buffer rotation.
            if single_buffer_invariants:
                return pl.BlockSpec(shape, lambda i: (0, 0),
                                    pipeline_mode=pl.Buffered(1))
            return pl.BlockSpec(shape, lambda i: (0, 0))

        in_specs = [
            pl.BlockSpec((tb, 2, n_symb, n_subc), lambda i: (i, 0, 0, 0)),
            inv_spec((1, n_subc)),        # dmrs mask
            inv_spec((n_subc, hidden)),   # w1 (bf16)
            inv_spec((1, hidden)),        # b1
            inv_spec((hidden, n_subc)),   # w2 (bf16)
            inv_spec((1, n_subc)),        # b2
        ]
        # TODO(synk): if profiling shows exposed DMA at large TB, sweep
        #             pipeline_mode=pl.Buffered(3) on the rx in_spec / comp
        #             out_spec (re-check the 64 MiB budget on v7x first).
        out_specs = [
            pl.BlockSpec((1, 2, tb, n_subc), lambda i: (i, 0, 0, 0)),
            pl.BlockSpec((tb, 2, n_symb, n_subc), lambda i: (i, 0, 0, 0)),
        ]
        return pl.pallas_call(
            kernel,
            out_shape=out_shape,
            grid_spec=pltpu.PrefetchScalarGridSpec(
                num_scalar_prefetch=0,
                grid=(nb,),
                in_specs=in_specs,
                out_specs=out_specs,
            ),
            compiler_params=pltpu.CompilerParams(
                dimension_semantics=("parallel",),
                vmem_limit_bytes=vmem_limit,
            ),
        )

    args = (rx_chfirst, mask2d, w1_bf, b1_2d, w2_bf, b2_2d)
    try:
        ch_est_4d, rx_sig_comp = _build(True)(*args)
    except Exception:
        # Installed Pallas rejects single-buffered (Buffered(1)) block specs;
        # fall back to default double-buffering for the invariant operands.
        ch_est_4d, rx_sig_comp = _build(False)(*args)

    # (nb, 2, TB, N) -> (B, N, 2); tiny tensor (matches PyTorch ch_est.transpose(1,2)).
    ch_est = jnp.transpose(ch_est_4d, (0, 2, 3, 1)).reshape(B, n_subc, 2)
    return ch_est, rx_sig_comp


def estimator_v3_forward(rx_signal, dmrs_mask, w1, b1, w2, b2, *, tb=None):
    """PyTorch-signature path: rx_signal in (B, n_symb, n_subc, 2).

    # TODO(synk): this movedim-equivalent transpose is a full HBM round trip
    # that XLA cannot fuse into the pallas_call; producers should emit
    # channels-first (B, 2, S, N) and call estimator_v3_forward_chfirst
    # directly (or the de-interleave should move into the kernel via a
    # lane-dense (S, 2N) bitcast view).
    """
    rx_chfirst = jnp.transpose(rx_signal, (0, 3, 1, 2))
    return estimator_v3_forward_chfirst(rx_chfirst, dmrs_mask, w1, b1, w2, b2, tb=tb)


def _reference_forward(rx_signal, dmrs_mask, w1, b1, w2, b2, n_subc):
    """Pure-JAX reference mirroring the PyTorch forward (MLP surrogate for ch_tf).

    Uses the same bf16-rounded weights the kernel stores, so the comparison
    exercises the kernel math rather than the intentional weight quantization.
    """
    w1 = w1.astype(jnp.bfloat16).astype(jnp.float32)
    w2 = w2.astype(jnp.bfloat16).astype(jnp.float32)
    rx = jnp.transpose(rx_signal, (0, 3, 1, 2))                 # (B,2,S,N)
    ch_in = rx[:, :, 0, :] * dmrs_mask[None, None, :]           # (B,2,N)
    ch_std = jnp.sqrt(jnp.sum(ch_in ** 2, axis=(1, 2), keepdims=True) / n_subc)
    ch_in_n = ch_in / ch_std
    h = jnp.maximum(jnp.einsum("bcn,nh->bch", ch_in_n, w1) + b1, 0.0)
    ch_est = jnp.einsum("bch,hn->bcn", h, w2) + b2
    ch_est = ch_est * ch_std
    rx_re, rx_im = rx[:, 0], rx[:, 1]                           # (B,S,N)
    ch_re = ch_est[:, 0, None, :]
    ch_im = ch_est[:, 1, None, :]
    denom = ch_re ** 2 + ch_im ** 2
    comp_re = (rx_re * ch_re + rx_im * ch_im) / denom
    comp_im = (-rx_re * ch_im + rx_im * ch_re) / denom
    comp = jnp.stack((comp_re, comp_im), axis=1)
    return jnp.transpose(ch_est, (0, 2, 1)), comp


if __name__ == "__main__":
    # Small shapes consistent with the module (full size would be S=14, N=3072).
    B, n_symb, n_subc, hidden = 8, 8, 128, 32
    dmrs_idx = np.arange(0, n_subc, 2)          # surrogate for ref_conf_dict['dmrs']

    key = jax.random.PRNGKey(0)
    k_rx, k_w1, k_b1, k_w2, k_b2 = jax.random.split(key, 5)

    # Producer emits channels-first (B, 2, S, N) directly — no host transpose
    # on the hot path before the pallas_call.
    rx_chfirst = jax.random.normal(k_rx, (B, 2, n_symb, n_subc), dtype=jnp.float32)

    # Deterministic surrogate ch_tf parameters.
    w1 = jax.random.normal(k_w1, (n_subc, hidden), jnp.float32) / np.sqrt(n_subc)
    b1 = jax.random.normal(k_b1, (hidden,), jnp.float32) * 0.01
    w2 = jax.random.normal(k_w2, (hidden, n_subc), jnp.float32) / np.sqrt(hidden)
    b2 = jax.random.normal(k_b2, (n_subc,), jnp.float32) * 0.01
    dmrs_mask = jnp.zeros((n_subc,), jnp.float32).at[dmrs_idx].set(1.0)

    ch_est, rx_sig_comp = estimator_v3_forward_chfirst(
        rx_chfirst, dmrs_mask, w1, b1, w2, b2)
    jax.block_until_ready((ch_est, rx_sig_comp))

    # Pure-JAX reference, starting from the original PyTorch (B, S, N, 2) layout.
    rx_torch_layout = jnp.transpose(rx_chfirst, (0, 2, 3, 1))
    ch_ref, comp_ref_arr = _reference_forward(
        rx_torch_layout, dmrs_mask, w1, b1, w2, b2, n_subc)

    assert ch_est.shape == (B, n_subc, 2)
    assert rx_sig_comp.shape == (B, 2, n_symb, n_subc)
    # ch_est tolerance covers the EUP rsqrt (~2^-12 rel) in normalize/de-normalize;
    # comp tolerance additionally allows for the unregularized MMSE divide being
    # ill-conditioned at deep channel fades (matches the PyTorch module, which
    # also has no epsilon in the denominator).
    np.testing.assert_allclose(np.asarray(ch_est), np.asarray(ch_ref),
                               rtol=3e-3, atol=3e-3)
    np.testing.assert_allclose(np.asarray(rx_sig_comp), np.asarray(comp_ref_arr),
                               rtol=1e-2, atol=1e-2)

    # Also exercise the PyTorch-signature compatibility wrapper once.
    ch_est2, comp2 = estimator_v3_forward(rx_torch_layout, dmrs_mask, w1, b1, w2, b2)
    jax.block_until_ready((ch_est2, comp2))
    np.testing.assert_allclose(np.asarray(ch_est2), np.asarray(ch_ref),
                               rtol=3e-3, atol=3e-3)
    np.testing.assert_allclose(np.asarray(comp2), np.asarray(comp_ref_arr),
                               rtol=1e-2, atol=1e-2)

    print("KERNEL_OK")
</pallas_src>

<mosaic_0001>
module attributes {stable_mosaic.version = 11 : i64} {
  func.func @_estimator_kernel(%arg0: i32, %arg1: memref<8x2x8x128xf32, #tpu.memory_space<vmem>>, %arg2: memref<1x128xf32, #tpu.memory_space<vmem>>, %arg3: memref<128x32xbf16, #tpu.memory_space<vmem>>, %arg4: memref<1x32xf32, #tpu.memory_space<vmem>>, %arg5: memref<32x128xbf16, #tpu.memory_space<vmem>>, %arg6: memref<1x128xf32, #tpu.memory_space<vmem>>, %arg7: memref<1x2x8x128xf32, #tpu.memory_space<vmem>>, %arg8: memref<8x2x8x128xf32, #tpu.memory_space<vmem>>) attributes {dimension_semantics = [#tpu.dimension_semantics<parallel>], iteration_bounds = array<i64: 1>, scalar_prefetch = 0 : i64, scratch_operands = 0 : i64, tpu.core_type = #tpu.core_type<tc>, window_params = [{transform_indices = @transform_0, window_bounds = array<i64: 8, 2, 8, 128>}, {pipeline_mode = #tpu.pipeline_mode<synchronous>, transform_indices = @transform_1, window_bounds = array<i64: 1, 128>}, {pipeline_mode = #tpu.pipeline_mode<synchronous>, transform_indices = @transform_2, window_bounds = array<i64: 128, 32>}, {pipeline_mode = #tpu.pipeline_mode<synchronous>, transform_indices = @transform_3, window_bounds = array<i64: 1, 32>}, {pipeline_mode = #tpu.pipeline_mode<synchronous>, transform_indices = @transform_4, window_bounds = array<i64: 32, 128>}, {pipeline_mode = #tpu.pipeline_mode<synchronous>, transform_indices = @transform_5, window_bounds = array<i64: 1, 128>}, {transform_indices = @transform_6, window_bounds = array<i64: 1, 2, 8, 128>}, {transform_indices = @transform_7, window_bounds = array<i64: 8, 2, 8, 128>}]} {
    %c0 = arith.constant 0 : index
    %c0_0 = arith.constant 0 : index
    %0 = vector.load %arg2[%c0, %c0_0] : memref<1x128xf32, #tpu.memory_space<vmem>>, vector<1x128xf32>
    %c0_1 = arith.constant 0 : index
    %c0_2 = arith.constant 0 : index
    %c0_3 = arith.constant 0 : index
    %c0_4 = arith.constant 0 : index
    %1 = vector.load %arg1[%c0_1, %c0_2, %c0_3, %c0_4] : memref<8x2x8x128xf32, #tpu.memory_space<vmem>>, vector<8x1x1x128xf32>
    %2 = vector.shape_cast %1 : vector<8x1x1x128xf32> to vector<8x128xf32>
    %3 = vector.broadcast %0 : vector<1x128xf32> to vector<8x128xf32>
    %4 = arith.mulf %2, %3 : vector<8x128xf32>
    %c0_5 = arith.constant 0 : index
    %c1 = arith.constant 1 : index
    %c0_6 = arith.constant 0 : index
    %c0_7 = arith.constant 0 : index
    %5 = vector.load %arg1[%c0_5, %c1, %c0_6, %c0_7] : memref<8x2x8x128xf32, #tpu.memory_space<vmem>>, vector<8x1x1x128xf32>
    %6 = vector.shape_cast %5 : vector<8x1x1x128xf32> to vector<8x128xf32>
    %7 = vector.broadcast %0 : vector<1x128xf32> to vector<8x128xf32>
    %8 = arith.mulf %6, %7 : vector<8x128xf32>
    %9 = arith.mulf %4, %4 : vector<8x128xf32>
    %10 = arith.mulf %8, %8 : vector<8x128xf32>
    %11 = arith.addf %9, %10 : vector<8x128xf32>
    %cst = arith.constant dense<0.000000e+00> : vector<8xf32>
    %12 = vector.multi_reduction <add>, %11, %cst [1] : vector<8x128xf32> to vector<8xf32>
    %13 = vector.shape_cast %12 : vector<8xf32> to vector<8x1xf32>
    %cst_8 = arith.constant 7.812500e-03 : f32
    %14 = vector.broadcast %cst_8 : f32 to vector<8x1xf32>
    %15 = arith.mulf %13, %14 : vector<8x1xf32>
    %16 = math.rsqrt %15 : vector<8x1xf32>
    %17 = arith.mulf %15, %16 : vector<8x1xf32>
    %18 = vector.broadcast %16 : vector<8x1xf32> to vector<8x128xf32>
    %19 = arith.mulf %4, %18 : vector<8x128xf32>
    %20 = vector.broadcast %16 : vector<8x1xf32> to vector<8x128xf32>
    %21 = arith.mulf %8, %20 : vector<8x128xf32>
    %22 = tpu.concatenate %19, %21 in 0 : vector<8x128xf32>, vector<8x128xf32> -> vector<16x128xf32>
    %c0_9 = arith.constant 0 : index
    %c0_10 = arith.constant 0 : index
    %23 = vector.load %arg3[%c0_9, %c0_10] : memref<128x32xbf16, #tpu.memory_space<vmem>>, vector<128x32xbf16>
    %24 = arith.extf %23 : vector<128x32xbf16> to vector<128x32xf32>
    %cst_11 = arith.constant dense<0.000000e+00> : vector<16x32xf32>
    %25 = tpu.matmul %22, %24, %cst_11 {dimension_numbers = #tpu.dot_dimension_numbers<[1], [0], [0], [1], [0, 0, 1, 1], [], []>} : vector<16x128xf32>, vector<128x32xf32>, vector<16x32xf32> -> vector<16x32xf32>
    %c0_12 = arith.constant 0 : index
    %c0_13 = arith.constant 0 : index
    %26 = vector.load %arg4[%c0_12, %c0_13] : memref<1x32xf32, #tpu.memory_space<vmem>>, vector<1x32xf32>
    %27 = vector.broadcast %26 : vector<1x32xf32> to vector<16x32xf32>
    %28 = arith.addf %25, %27 : vector<16x32xf32>
    %cst_14 = arith.constant 0.000000e+00 : f32
    %29 = vector.broadcast %cst_14 : f32 to vector<16x32xf32>
    %30 = arith.maximumf %28, %29 : vector<16x32xf32>
    %c0_15 = arith.constant 0 : index
    %c0_16 = arith.constant 0 : index
    %31 = vector.load %arg5[%c0_15, %c0_16] : memref<32x128xbf16, #tpu.memory_space<vmem>>, vector<32x128xbf16>
    %32 = arith.extf %31 : vector<32x128xbf16> to vector<32x128xf32>
    %cst_17 = arith.constant dense<0.000000e+00> : vector<16x128xf32>
    %33 = tpu.matmul %30, %32, %cst_17 {dimension_numbers = #tpu.dot_dimension_numbers<[1], [0], [0], [1], [0, 0, 1, 1], [], []>} : vector<16x32xf32>, vector<32x128xf32>, vector<16x128xf32> -> vector<16x128xf32>
    %c0_18 = arith.constant 0 : index
    %c0_19 = arith.constant 0 : index
    %34 = vector.load %arg6[%c0_18, %c0_19] : memref<1x128xf32, #tpu.memory_space<vmem>>, vector<1x128xf32>
    %35 = vector.broadcast %34 : vector<1x128xf32> to vector<16x128xf32>
    %36 = arith.addf %33, %35 : vector<16x128xf32>
    %37 = vector.extract_strided_slice %36 {offsets = [0, 0], sizes = [8, 128], strides = [1, 1]} : vector<16x128xf32> to vector<8x128xf32>
    %38 = vector.broadcast %17 : vector<8x1xf32> to vector<8x128xf32>
    %39 = arith.mulf %37, %38 : vector<8x128xf32>
    %40 = vector.extract_strided_slice %36 {offsets = [8, 0], sizes = [8, 128], strides = [1, 1]} : vector<16x128xf32> to vector<8x128xf32>
    %41 = vector.broadcast %17 : vector<8x1xf32> to vector<8x128xf32>
    %42 = arith.mulf %40, %41 : vector<8x128xf32>
    %c0_20 = arith.constant 0 : index
    %c0_21 = arith.constant 0 : index
    %c0_22 = arith.constant 0 : index
    %c0_23 = arith.constant 0 : index
    %43 = vector.load %arg7[%c0_20, %c0_21, %c0_22, %c0_23] : memref<1x2x8x128xf32, #tpu.memory_space<vmem>>, vector<1x1x8x128xf32>
    %44 = vector.shape_cast %43 : vector<1x1x8x128xf32> to vector<8x128xf32>
    %45 = vector.shape_cast %39 : vector<8x128xf32> to vector<1x1x8x128xf32>
    tpu.vector_store %arg7[%c0_20, %c0_21, %c0_22, %c0_23], %45 {strides = array<i32>} : memref<1x2x8x128xf32, #tpu.memory_space<vmem>>, vector<1x1x8x128xf32>,
    %c0_24 = arith.constant 0 : index
    %c1_25 = arith.constant 1 : index
    %c0_26 = arith.constant 0 : index
    %c0_27 = arith.constant 0 : index
    %46 = vector.load %arg7[%c0_24, %c1_25, %c0_26, %c0_27] : memref<1x2x8x128xf32, #tpu.memory_space<vmem>>, vector<1x1x8x128xf32>
    %47 = vector.shape_cast %46 : vector<1x1x8x128xf32> to vector<8x128xf32>
    %48 = vector.shape_cast %42 : vector<8x128xf32> to vector<1x1x8x128xf32>
    tpu.vector_store %arg7[%c0_24, %c1_25, %c0_26, %c0_27], %48 {strides = array<i32>} : memref<1x2x8x128xf32, #tpu.memory_space<vmem>>, vector<1x1x8x128xf32>,
    %49 = arith.mulf %39, %39 : vector<8x128xf32>
    %50 = arith.mulf %42, %42 : vector<8x128xf32>
    %51 = arith.addf %49, %50 : vector<8x128xf32>
    %52 = tpu.reciprocal %51 {approx = true} : vector<8x128xf32> -> vector<8x128xf32>
    %53 = arith.mulf %51, %52 : vector<8x128xf32>
    %cst_28 = arith.constant 2.000000e+00 : f32
    %54 = vector.broadcast %cst_28 : f32 to vector<8x128xf32>
    %55 = arith.subf %54, %53 : vector<8x128xf32>
    %56 = arith.mulf %52, %55 : vector<8x128xf32>
    %57 = arith.mulf %39, %56 : vector<8x128xf32>
    %58 = vector.shape_cast %57 : vector<8x128xf32> to vector<8x1x128xf32>
    %59 = arith.mulf %42, %56 : vector<8x128xf32>
    %60 = vector.shape_cast %59 : vector<8x128xf32> to vector<8x1x128xf32>
    %c0_29 = arith.constant 0 : index
    %c0_30 = arith.constant 0 : index
    %c0_31 = arith.constant 0 : index
    %c0_32 = arith.constant 0 : index
    %61 = vector.load %arg1[%c0_29, %c0_30, %c0_31, %c0_32] : memref<8x2x8x128xf32, #tpu.memory_space<vmem>>, vector<8x1x8x128xf32>
    %62 = vector.shape_cast %61 : vector<8x1x8x128xf32> to vector<8x8x128xf32>
    %63 = vector.broadcast %58 : vector<8x1x128xf32> to vector<8x8x128xf32>
    %64 = arith.mulf %62, %63 : vector<8x8x128xf32>
    %c0_33 = arith.constant 0 : index
    %c1_34 = arith.constant 1 : index
    %c0_35 = arith.constant 0 : index
    %c0_36 = arith.constant 0 : index
    %65 = vector.load %arg1[%c0_33, %c1_34, %c0_35, %c0_36] : memref<8x2x8x128xf32, #tpu.memory_space<vmem>>, vector<8x1x8x128xf32>
    %66 = vector.shape_cast %65 : vector<8x1x8x128xf32> to vector<8x8x128xf32>
    %67 = vector.broadcast %60 : vector<8x1x128xf32> to vector<8x8x128xf32>
    %68 = arith.mulf %66, %67 : vector<8x8x128xf32>
    %69 = arith.addf %64, %68 : vector<8x8x128xf32>
    %c0_37 = arith.constant 0 : index
    %c0_38 = arith.constant 0 : index
    %c0_39 = arith.constant 0 : index
    %c0_40 = arith.constant 0 : index
    %70 = vector.load %arg8[%c0_37, %c0_38, %c0_39, %c0_40] : memref<8x2x8x128xf32, #tpu.memory_space<vmem>>, vector<8x1x8x128xf32>
    %71 = vector.shape_cast %70 : vector<8x1x8x128xf32> to vector<8x8x128xf32>
    %72 = vector.shape_cast %69 : vector<8x8x128xf32> to vector<8x1x8x128xf32>
    tpu.vector_store %arg8[%c0_37, %c0_38, %c0_39, %c0_40], %72 {strides = array<i32>} : memref<8x2x8x128xf32, #tpu.memory_space<vmem>>, vector<8x1x8x128xf32>,
    %c0_41 = arith.constant 0 : index
    %c1_42 = arith.constant 1 : index
    %c0_43 = arith.constant 0 : index
    %c0_44 = arith.constant 0 : index
    %73 = vector.load %arg1[%c0_41, %c1_42, %c0_43, %c0_44] : memref<8x2x8x128xf32, #tpu.memory_space<vmem>>, vector<8x1x8x128xf32>
    %74 = vector.shape_cast %73 : vector<8x1x8x128xf32> to vector<8x8x128xf32>
    %75 = vector.broadcast %58 : vector<8x1x128xf32> to vector<8x8x128xf32>
    %76 = arith.mulf %74, %75 : vector<8x8x128xf32>
    %c0_45 = arith.constant 0 : index
    %c0_46 = arith.constant 0 : index
    %c0_47 = arith.constant 0 : index
    %c0_48 = arith.constant 0 : index
    %77 = vector.load %arg1[%c0_45, %c0_46, %c0_47, %c0_48] : memref<8x2x8x128xf32, #tpu.memory_space<vmem>>, vector<8x1x8x128xf32>
    %78 = vector.shape_cast %77 : vector<8x1x8x128xf32> to vector<8x8x128xf32>
    %79 = vector.broadcast %60 : vector<8x1x128xf32> to vector<8x8x128xf32>
    %80 = arith.mulf %78, %79 : vector<8x8x128xf32>
    %81 = arith.subf %76, %80 : vector<8x8x128xf32>
    %c0_49 = arith.constant 0 : index
    %c1_50 = arith.constant 1 : index
    %c0_51 = arith.constant 0 : index
    %c0_52 = arith.constant 0 : index
    %82 = vector.load %arg8[%c0_49, %c1_50, %c0_51, %c0_52] : memref<8x2x8x128xf32, #tpu.memory_space<vmem>>, vector<8x1x8x128xf32>
    %83 = vector.shape_cast %82 : vector<8x1x8x128xf32> to vector<8x8x128xf32>
    %84 = vector.shape_cast %81 : vector<8x8x128xf32> to vector<8x1x8x128xf32>
    tpu.vector_store %arg8[%c0_49, %c1_50, %c0_51, %c0_52], %84 {strides = array<i32>} : memref<8x2x8x128xf32, #tpu.memory_space<vmem>>, vector<8x1x8x128xf32>,
    return
  }
  func.func @transform_0(%arg0: i32) -> (i32, i32, i32, i32) {
    %c0_i32 = arith.constant 0 : i32
    %c0_i32_0 = arith.constant 0 : i32
    %c0_i32_1 = arith.constant 0 : i32
    %c0_i32_2 = arith.constant 0 : i32
    return %arg0, %c0_i32, %c0_i32_0, %c0_i32_1 : i32, i32, i32, i32
  }
  func.func @transform_1(%arg0: i32) -> (i32, i32) {
    %c0_i32 = arith.constant 0 : i32
    %c0_i32_0 = arith.constant 0 : i32
    %c0_i32_1 = arith.constant 0 : i32
    return %c0_i32, %c0_i32_0 : i32, i32
  }
  func.func @transform_2(%arg0: i32) -> (i32, i32) {
    %c0_i32 = arith.constant 0 : i32
    %c0_i32_0 = arith.constant 0 : i32
    %c0_i32_1 = arith.constant 0 : i32
    return %c0_i32, %c0_i32_0 : i32, i32
  }
  func.func @transform_3(%arg0: i32) -> (i32, i32) {
    %c0_i32 = arith.constant 0 : i32
    %c0_i32_0 = arith.constant 0 : i32
    %c0_i32_1 = arith.constant 0 : i32
    return %c0_i32, %c0_i32_0 : i32, i32
  }
  func.func @transform_4(%arg0: i32) -> (i32, i32) {
    %c0_i32 = arith.constant 0 : i32
    %c0_i32_0 = arith.constant 0 : i32
    %c0_i32_1 = arith.constant 0 : i32
    return %c0_i32, %c0_i32_0 : i32, i32
  }
  func.func @transform_5(%arg0: i32) -> (i32, i32) {
    %c0_i32 = arith.constant 0 : i32
    %c0_i32_0 = arith.constant 0 : i32
    %c0_i32_1 = arith.constant 0 : i32
    return %c0_i32, %c0_i32_0 : i32, i32
  }
  func.func @transform_6(%arg0: i32) -> (i32, i32, i32, i32) {
    %c0_i32 = arith.constant 0 : i32
    %c0_i32_0 = arith.constant 0 : i32
    %c0_i32_1 = arith.constant 0 : i32
    %c0_i32_2 = arith.constant 0 : i32
    return %arg0, %c0_i32, %c0_i32_0, %c0_i32_1 : i32, i32, i32, i32
  }
  func.func @transform_7(%arg0: i32) -> (i32, i32, i32, i32) {
    %c0_i32 = arith.constant 0 : i32
    %c0_i32_0 = arith.constant 0 : i32
    %c0_i32_1 = arith.constant 0 : i32
    %c0_i32_2 = arith.constant 0 : i32
    return %arg0, %c0_i32, %c0_i32_0, %c0_i32_1 : i32, i32, i32, i32
  }
}

module attributes {stable_mosaic.version = 11 : i64} {
  func.func @_estimator_kernel(%arg0: i32, %arg1: memref<8x2x8x128xf32, #tpu.memory_space<vmem>>, %arg2: memref<1x128xf32, #tpu.memory_space<vmem>>, %arg3: memref<128x32xbf16, #tpu.memory_space<vmem>>, %arg4: memref<1x32xf32, #tpu.memory_space<vmem>>, %arg5: memref<32x128xbf16, #tpu.memory_space<vmem>>, %arg6: memref<1x128xf32, #tpu.memory_space<vmem>>, %arg7: memref<1x2x8x128xf32, #tpu.memory_space<vmem>>, %arg8: memref<8x2x8x128xf32, #tpu.memory_space<vmem>>) attributes {dimension_semantics = [#tpu.dimension_semantics<parallel>], iteration_bounds = array<i64: 1>, scalar_prefetch = 0 : i64, scratch_operands = 0 : i64, tpu.core_type = #tpu.core_type<tc>, window_params = [{transform_indices = @transform_0, window_bounds = array<i64: 8, 2, 8, 128>}, {pipeline_mode = #tpu.pipeline_mode<synchronous>, transform_indices = @transform_1, window_bounds = array<i64: 1, 128>}, {pipeline_mode = #tpu.pipeline_mode<synchronous>, transform_indices = @transform_2, window_bounds = array<i64: 128, 32>}, {pipeline_mode = #tpu.pipeline_mode<synchronous>, transform_indices = @transform_3, window_bounds = array<i64: 1, 32>}, {pipeline_mode = #tpu.pipeline_mode<synchronous>, transform_indices = @transform_4, window_bounds = array<i64: 32, 128>}, {pipeline_mode = #tpu.pipeline_mode<synchronous>, transform_indices = @transform_5, window_bounds = array<i64: 1, 128>}, {transform_indices = @transform_6, window_bounds = array<i64: 1, 2, 8, 128>}, {transform_indices = @transform_7, window_bounds = array<i64: 8, 2, 8, 128>}]} {
    %c0 = arith.constant 0 : index
    %c0_0 = arith.constant 0 : index
    %0 = vector.load %arg2[%c0, %c0_0] : memref<1x128xf32, #tpu.memory_space<vmem>>, vector<1x128xf32>
    %c0_1 = arith.constant 0 : index
    %c0_2 = arith.constant 0 : index
    %c0_3 = arith.constant 0 : index
    %c0_4 = arith.constant 0 : index
    %1 = vector.load %arg1[%c0_1, %c0_2, %c0_3, %c0_4] : memref<8x2x8x128xf32, #tpu.memory_space<vmem>>, vector<8x1x1x128xf32>
    %2 = vector.shape_cast %1 : vector<8x1x1x128xf32> to vector<8x128xf32>
    %3 = vector.broadcast %0 : vector<1x128xf32> to vector<8x128xf32>
    %4 = arith.mulf %2, %3 : vector<8x128xf32>
    %c0_5 = arith.constant 0 : index
    %c1 = arith.constant 1 : index
    %c0_6 = arith.constant 0 : index
    %c0_7 = arith.constant 0 : index
    %5 = vector.load %arg1[%c0_5, %c1, %c0_6, %c0_7] : memref<8x2x8x128xf32, #tpu.memory_space<vmem>>, vector<8x1x1x128xf32>
    %6 = vector.shape_cast %5 : vector<8x1x1x128xf32> to vector<8x128xf32>
    %7 = vector.broadcast %0 : vector<1x128xf32> to vector<8x128xf32>
    %8 = arith.mulf %6, %7 : vector<8x128xf32>
    %9 = arith.mulf %4, %4 : vector<8x128xf32>
    %10 = arith.mulf %8, %8 : vector<8x128xf32>
    %11 = arith.addf %9, %10 : vector<8x128xf32>
    %cst = arith.constant dense<0.000000e+00> : vector<8xf32>
    %12 = vector.multi_reduction <add>, %11, %cst [1] : vector<8x128xf32> to vector<8xf32>
    %13 = vector.shape_cast %12 : vector<8xf32> to vector<8x1xf32>
    %cst_8 = arith.constant 7.812500e-03 : f32
    %14 = vector.broadcast %cst_8 : f32 to vector<8x1xf32>
    %15 = arith.mulf %13, %14 : vector<8x1xf32>
    %16 = math.rsqrt %15 : vector<8x1xf32>
    %17 = arith.mulf %15, %16 : vector<8x1xf32>
    %18 = vector.broadcast %16 : vector<8x1xf32> to vector<8x128xf32>
    %19 = arith.mulf %4, %18 : vector<8x128xf32>
    %20 = vector.broadcast %16 : vector<8x1xf32> to vector<8x128xf32>
    %21 = arith.mulf %8, %20 : vector<8x128xf32>
    %22 = tpu.concatenate %19, %21 in 0 : vector<8x128xf32>, vector<8x128xf32> -> vector<16x128xf32>
    %c0_9 = arith.constant 0 : index
    %c0_10 = arith.constant 0 : index
    %23 = vector.load %arg3[%c0_9, %c0_10] : memref<128x32xbf16, #tpu.memory_space<vmem>>, vector<128x32xbf16>
    %24 = arith.extf %23 : vector<128x32xbf16> to vector<128x32xf32>
    %cst_11 = arith.constant dense<0.000000e+00> : vector<16x32xf32>
    %25 = tpu.matmul %22, %24, %cst_11 {dimension_numbers = #tpu.dot_dimension_numbers<[1], [0], [0], [1], [0, 0, 1, 1], [], []>} : vector<16x128xf32>, vector<128x32xf32>, vector<16x32xf32> -> vector<16x32xf32>
    %c0_12 = arith.constant 0 : index
    %c0_13 = arith.constant 0 : index
    %26 = vector.load %arg4[%c0_12, %c0_13] : memref<1x32xf32, #tpu.memory_space<vmem>>, vector<1x32xf32>
    %27 = vector.broadcast %26 : vector<1x32xf32> to vector<16x32xf32>
    %28 = arith.addf %25, %27 : vector<16x32xf32>
    %cst_14 = arith.constant 0.000000e+00 : f32
    %29 = vector.broadcast %cst_14 : f32 to vector<16x32xf32>
    %30 = arith.maximumf %28, %29 : vector<16x32xf32>
    %c0_15 = arith.constant 0 : index
    %c0_16 = arith.constant 0 : index
    %31 = vector.load %arg5[%c0_15, %c0_16] : memref<32x128xbf16, #tpu.memory_space<vmem>>, vector<32x128xbf16>
    %32 = arith.extf %31 : vector<32x128xbf16> to vector<32x128xf32>
    %cst_17 = arith.constant dense<0.000000e+00> : vector<16x128xf32>
    %33 = tpu.matmul %30, %32, %cst_17 {dimension_numbers = #tpu.dot_dimension_numbers<[1], [0], [0], [1], [0, 0, 1, 1], [], []>} : vector<16x32xf32>, vector<32x128xf32>, vector<16x128xf32> -> vector<16x128xf32>
    %c0_18 = arith.constant 0 : index
    %c0_19 = arith.constant 0 : index
    %34 = vector.load %arg6[%c0_18, %c0_19] : memref<1x128xf32, #tpu.memory_space<vmem>>, vector<1x128xf32>
    %35 = vector.broadcast %34 : vector<1x128xf32> to vector<16x128xf32>
    %36 = arith.addf %33, %35 : vector<16x128xf32>
    %37 = vector.extract_strided_slice %36 {offsets = [0, 0], sizes = [8, 128], strides = [1, 1]} : vector<16x128xf32> to vector<8x128xf32>
    %38 = vector.broadcast %17 : vector<8x1xf32> to vector<8x128xf32>
    %39 = arith.mulf %37, %38 : vector<8x128xf32>
    %40 = vector.extract_strided_slice %36 {offsets = [8, 0], sizes = [8, 128], strides = [1, 1]} : vector<16x128xf32> to vector<8x128xf32>
    %41 = vector.broadcast %17 : vector<8x1xf32> to vector<8x128xf32>
    %42 = arith.mulf %40, %41 : vector<8x128xf32>
    %c0_20 = arith.constant 0 : index
    %c0_21 = arith.constant 0 : index
    %c0_22 = arith.constant 0 : index
    %c0_23 = arith.constant 0 : index
    %43 = vector.load %arg7[%c0_20, %c0_21, %c0_22, %c0_23] : memref<1x2x8x128xf32, #tpu.memory_space<vmem>>, vector<1x1x8x128xf32>
    %44 = vector.shape_cast %43 : vector<1x1x8x128xf32> to vector<8x128xf32>
    %45 = vector.shape_cast %39 : vector<8x128xf32> to vector<1x1x8x128xf32>
    tpu.vector_store %arg7[%c0_20, %c0_21, %c0_22, %c0_23], %45 {strides = array<i32>} : memref<1x2x8x128xf32, #tpu.memory_space<vmem>>, vector<1x1x8x128xf32>,
    %c0_24 = arith.constant 0 : index
    %c1_25 = arith.constant 1 : index
    %c0_26 = arith.constant 0 : index
    %c0_27 = arith.constant 0 : index
    %46 = vector.load %arg7[%c0_24, %c1_25, %c0_26, %c0_27] : memref<1x2x8x128xf32, #tpu.memory_space<vmem>>, vector<1x1x8x128xf32>
    %47 = vector.shape_cast %46 : vector<1x1x8x128xf32> to vector<8x128xf32>
    %48 = vector.shape_cast %42 : vector<8x128xf32> to vector<1x1x8x128xf32>
    tpu.vector_store %arg7[%c0_24, %c1_25, %c0_26, %c0_27], %48 {strides = array<i32>} : memref<1x2x8x128xf32, #tpu.memory_space<vmem>>, vector<1x1x8x128xf32>,
    %49 = arith.mulf %39, %39 : vector<8x128xf32>
    %50 = arith.mulf %42, %42 : vector<8x128xf32>
    %51 = arith.addf %49, %50 : vector<8x128xf32>
    %52 = tpu.reciprocal %51 {approx = true} : vector<8x128xf32> -> vector<8x128xf32>
    %53 = arith.mulf %51, %52 : vector<8x128xf32>
    %cst_28 = arith.constant 2.000000e+00 : f32
    %54 = vector.broadcast %cst_28 : f32 to vector<8x128xf32>
    %55 = arith.subf %54, %53 : vector<8x128xf32>
    %56 = arith.mulf %52, %55 : vector<8x128xf32>
    %57 = arith.mulf %39, %56 : vector<8x128xf32>
    %58 = vector.shape_cast %57 : vector<8x128xf32> to vector<8x1x128xf32>
    %59 = arith.mulf %42, %56 : vector<8x128xf32>
    %60 = vector.shape_cast %59 : vector<8x128xf32> to vector<8x1x128xf32>
    %c0_29 = arith.constant 0 : index
    %c0_30 = arith.constant 0 : index
    %c0_31 = arith.constant 0 : index
    %c0_32 = arith.constant 0 : index
    %61 = vector.load %arg1[%c0_29, %c0_30, %c0_31, %c0_32] : memref<8x2x8x128xf32, #tpu.memory_space<vmem>>, vector<8x1x8x128xf32>
    %62 = vector.shape_cast %61 : vector<8x1x8x128xf32> to vector<8x8x128xf32>
    %63 = vector.broadcast %58 : vector<8x1x128xf32> to vector<8x8x128xf32>
    %64 = arith.mulf %62, %63 : vector<8x8x128xf32>
    %c0_33 = arith.constant 0 : index
    %c1_34 = arith.constant 1 : index
    %c0_35 = arith.constant 0 : index
    %c0_36 = arith.constant 0 : index
    %65 = vector.load %arg1[%c0_33, %c1_34, %c0_35, %c0_36] : memref<8x2x8x128xf32, #tpu.memory_space<vmem>>, vector<8x1x8x128xf32>
    %66 = vector.shape_cast %65 : vector<8x1x8x128xf32> to vector<8x8x128xf32>
    %67 = vector.broadcast %60 : vector<8x1x128xf32> to vector<8x8x128xf32>
    %68 = arith.mulf %66, %67 : vector<8x8x128xf32>
    %69 = arith.addf %64, %68 : vector<8x8x128xf32>
    %c0_37 = arith.constant 0 : index
    %c0_38 = arith.constant 0 : index
    %c0_39 = arith.constant 0 : index
    %c0_40 = arith.constant 0 : index
    %70 = vector.load %arg8[%c0_37, %c0_38, %c0_39, %c0_40] : memref<8x2x8x128xf32, #tpu.memory_space<vmem>>, vector<8x1x8x128xf32>
    %71 = vector.shape_cast %70 : vector<8x1x8x128xf32> to vector<8x8x128xf32>
    %72 = vector.shape_cast %69 : vector<8x8x128xf32> to vector<8x1x8x128xf32>
    tpu.vector_store %arg8[%c0_37, %c0_38, %c0_39, %c0_40], %72 {strides = array<i32>} : memref<8x2x8x128xf32, #tpu.memory_space<vmem>>, vector<8x1x8x128xf32>,
    %c0_41 = arith.constant 0 : index
    %c1_42 = arith.constant 1 : index
    %c0_43 = arith.constant 0 : index
    %c0_44 = arith.constant 0 : index
    %73 = vector.load %arg1[%c0_41, %c1_42, %c0_43, %c0_44] : memref<8x2x8x128xf32, #tpu.memory_space<vmem>>, vector<8x1x8x128xf32>
    %74 = vector.shape_cast %73 : vector<8x1x8x128xf32> to vector<8x8x128xf32>
    %75 = vector.broadcast %58 : vector<8x1x128xf32> to vector<8x8x128xf32>
    %76 = arith.mulf %74, %75 : vector<8x8x128xf32>
    %c0_45 = arith.constant 0 : index
    %c0_46 = arith.constant 0 : index
    %c0_47 = arith.constant 0 : index
    %c0_48 = arith.constant 0 : index
    %77 = vector.load %arg1[%c0_45, %c0_46, %c0_47, %c0_48] : memref<8x2x8x128xf32, #tpu.memory_space<vmem>>, vector<8x1x8x128xf32>
    %78 = vector.shape_cast %77 : vector<8x1x8x128xf32> to vector<8x8x128xf32>
    %79 = vector.broadcast %60 : vector<8x1x128xf32> to vector<8x8x128xf32>
    %80 = arith.mulf %78, %79 : vector<8x8x128xf32>
    %81 = arith.subf %76, %80 : vector<8x8x128xf32>
    %c0_49 = arith.constant 0 : index
    %c1_50 = arith.constant 1 : index
    %c0_51 = arith.constant 0 : index
    %c0_52 = arith.constant 0 : index
    %82 = vector.load %arg8[%c0_49, %c1_50, %c0_51, %c0_52] : memref<8x2x8x128xf32, #tpu.memory_space<vmem>>, vector<8x1x8x128xf32>
    %83 = vector.shape_cast %82 : vector<8x1x8x128xf32> to vector<8x8x128xf32>
    %84 = vector.shape_cast %81 : vector<8x8x128xf32> to vector<8x1x8x128xf32>
    tpu.vector_store %arg8[%c0_49, %c1_50, %c0_51, %c0_52], %84 {strides = array<i32>} : memref<8x2x8x128xf32, #tpu.memory_space<vmem>>, vector<8x1x8x128xf32>,
    return
  }
  func.func @transform_0(%arg0: i32) -> (i32, i32, i32, i32) {
    %c0_i32 = arith.constant 0 : i32
    %c0_i32_0 = arith.constant 0 : i32
    %c0_i32_1 = arith.constant 0 : i32
    %c0_i32_2 = arith.constant 0 : i32
    return %arg0, %c0_i32, %c0_i32_0, %c0_i32_1 : i32, i32, i32, i32
  }
  func.func @transform_1(%arg0: i32) -> (i32, i32) {
    %c0_i32 = arith.constant 0 : i32
    %c0_i32_0 = arith.constant 0 : i32
    %c0_i32_1 = arith.constant 0 : i32
    return %c0_i32, %c0_i32_0 : i32, i32
  }
  func.func @transform_2(%arg0: i32) -> (i32, i32) {
    %c0_i32 = arith.constant 0 : i32
    %c0_i32_0 = arith.constant 0 : i32
    %c0_i32_1 = arith.constant 0 : i32
    return %c0_i32, %c0_i32_0 : i32, i32
  }
  func.func @transform_3(%arg0: i32) -> (i32, i32) {
    %c0_i32 = arith.constant 0 : i32
    %c0_i32_0 = arith.constant 0 : i32
    %c0_i32_1 = arith.constant 0 : i32
    return %c0_i32, %c0_i32_0 : i32, i32
  }
  func.func @transform_4(%arg0: i32) -> (i32, i32) {
    %c0_i32 = arith.constant 0 : i32
    %c0_i32_0 = arith.constant 0 : i32
    %c0_i32_1 = arith.constant 0 : i32
    return %c0_i32, %c0_i32_0 : i32, i32
  }
  func.func @transform_5(%arg0: i32) -> (i32, i32) {
    %c0_i32 = arith.constant 0 : i32
    %c0_i32_0 = arith.constant 0 : i32
    %c0_i32_1 = arith.constant 0 : i32
    return %c0_i32, %c0_i32_0 : i32, i32
  }
  func.func @transform_6(%arg0: i32) -> (i32, i32, i32, i32) {
    %c0_i32 = arith.constant 0 : i32
    %c0_i32_0 = arith.constant 0 : i32
    %c0_i32_1 = arith.constant 0 : i32
    %c0_i32_2 = arith.constant 0 : i32
    return %arg0, %c0_i32, %c0_i32_0, %c0_i32_1 : i32, i32, i32, i32
  }
  func.func @transform_7(%arg0: i32) -> (i32, i32, i32, i32) {
    %c0_i32 = arith.constant 0 : i32
    %c0_i32_0 = arith.constant 0 : i32
    %c0_i32_1 = arith.constant 0 : i32
    %c0_i32_2 = arith.constant 0 : i32
    return %arg0, %c0_i32, %c0_i32_0, %c0_i32_1 : i32, i32, i32, i32
  }
}

</mosaic_0001>

<llo_original>
// kernel: tpu_custom_call.1
$region0: #{tpu_custom_call.1}
  #allocation0 [shape = 'u32[]', space=smem, size = 0x4, offset = 0x4, fixed_abs, tag = 'smem constant byte address 0x4 - core index']
  #allocation1 [shape = 'u32[144,128]{1,0:T(1,128)}', space=vmem, size = 0x12000, scoped, tag = 'internal scratch']
  %s0 = inlined_call_operand.hbm [shape: f32[8,2,8,128], index: 0, kind: input, shape index: {}]
  %s1 = inlined_call_operand.vmem [shape: f32[1,128], index: 1, kind: input, shape index: {}]
  %s2 = inlined_call_operand.vmem [shape: bf16[128,32], index: 2, kind: input, shape index: {}]
  %s3 = inlined_call_operand.vmem [shape: f32[1,32], index: 3, kind: input, shape index: {}]
  %s4 = inlined_call_operand.vmem [shape: bf16[32,128], index: 4, kind: input, shape index: {}]
  %s5 = inlined_call_operand.vmem [shape: f32[1,128], index: 5, kind: input, shape index: {}]
  %s6 = inlined_call_operand.hbm [shape: f32[1,2,8,128], index: 6, kind: output, shape index: {0}]
  %s7 = inlined_call_operand.hbm [shape: f32[8,2,8,128], index: 7, kind: output, shape index: {1}]
  %8 = xla_tuple %s6, %s7
  %s9 = sld [smem:[#allocation0]]
  $region46: #{tpu_custom_call.1} parent=0
    _
  %s11 = ssub.s32 1, %s9
  %s12 = scalar_select 0, %s11, %s9
  $region1: #{tpu_custom_call.1} parent=0
    #allocation2 [shape = 'u8[65536]{0}', space=vmem, size = 0x10000, scoped, tag = 'input window, operand 0, single buffered']
    #allocation3 [shape = 's32[1]{0}', space=sflag, size = 0x4, scoped, tag = 'scoped memory for tpu_custom_call.1']
    #allocation4 [shape = 's32[1]{0}', space=sflag, size = 0x4, scoped, tag = 'scoped memory for tpu_custom_call.1']
    #allocation5 [shape = 'u8[8192]{0}', space=vmem, size = 0x2000, scoped, tag = 'output window, operand 0, single buffered']
    #allocation6 [shape = 'u8[65536]{0}', space=vmem, size = 0x10000, scoped, tag = 'output window, operand 1, single buffered']
    #allocation7 [shape = 's32[1]{0}', space=sflag, size = 0x4, scoped, tag = 'scoped memory for tpu_custom_call.1']
    %13 = vsyncpa [#allocation3], 0
    %14 = vsyncpa [#allocation4], 0
    %15 = vsyncpa [#allocation7], 0
    // Predicated region
    $region2: #{tpu_custom_call.1} parent=1 // pred_check
      _
    $region3: #{tpu_custom_call.1} parent=1 // pred_check_branch
      %17 = sbr.rel (0) target = $region5
    $region4: #{tpu_custom_call.1} parent=1 // pred_region
      %s19 = ssub.s32 2048, 2048
      %20 = vsyncadd [#allocation3], %s19
      %s21 = sshll.u32 [#allocation2], 4
      %s22 = int_to_ptr.vmem [resolvable:$true] %s21
      %27 = dma.hbm_to_vmem [thread:$0]  %s0, 2048, %s22, [#allocation3], 128, 128, 8
    $region5: #{tpu_custom_call.1} parent=1 // pred_fallthru
      _
    // Predicated region
    $region6: #{tpu_custom_call.1} parent=1 // pred_check
      _
    $region7: #{tpu_custom_call.1} parent=1 // pred_check_branch
      %29 = sbr.rel (0) target = $region9
    $region8: #{tpu_custom_call.1} parent=1 // pred_region
      _
    $region9: #{tpu_custom_call.1} parent=1 // pred_fallthru
      _
    // Predicated region
    $region10: #{tpu_custom_call.1} parent=1 // pred_check
      _
    $region11: #{tpu_custom_call.1} parent=1 // pred_check_branch
      %31 = sbr.rel (0) target = $region13
    $region12: #{tpu_custom_call.1} parent=1 // pred_region
      _
    $region13: #{tpu_custom_call.1} parent=1 // pred_fallthru
      _
    // Predicated region
    $region14: #{tpu_custom_call.1} parent=1 // pred_check
      _
    $region15: #{tpu_custom_call.1} parent=1 // pred_check_branch
      %33 = sbr.rel (0) target = $region17
    $region16: #{tpu_custom_call.1} parent=1 // pred_region
      _
    $region17: #{tpu_custom_call.1} parent=1 // pred_fallthru
      _
    // Predicated region
    $region18: #{tpu_custom_call.1} parent=1 // pred_check
      _
    $region19: #{tpu_custom_call.1} parent=1 // pred_check_branch
      %35 = sbr.rel (0) target = $region21
    $region20: #{tpu_custom_call.1} parent=1 // pred_region
      _
    $region21: #{tpu_custom_call.1} parent=1 // pred_fallthru
      _
    // Predicated region
    $region22: #{tpu_custom_call.1} parent=1 // pred_check
      _
    $region23: #{tpu_custom_call.1} parent=1 // pred_check_branch
      %37 = sbr.rel (0) target = $region25
    $region24: #{tpu_custom_call.1} parent=1 // pred_region
      _
    $region25: #{tpu_custom_call.1} parent=1 // pred_fallthru
      _
    // Predicated region
    $region26: #{tpu_custom_call.1} parent=1 // pred_check
      _
    $region27: #{tpu_custom_call.1} parent=1 // pred_check_branch
      %39 = sbr.rel (0) target = $region29
    $region28: #{tpu_custom_call.1} parent=1 // pred_region
      %40 = dma.done [#allocation3], 2048
    $region29: #{tpu_custom_call.1} parent=1 // pred_fallthru
      _
    %v41 = vld [vmem:[%s1] sm:$0x1]
    %v42 = vld [vmem:[#allocation2] sm:$0x1]
    %v43 = vld [vmem:[#allocation2 + $0x10] sm:$0x1]
    %v44 = vld [vmem:[#allocation2 + $0x20] sm:$0x1]
    %v45 = vld [vmem:[#allocation2 + $0x30] sm:$0x1]
    %v46 = vld [vmem:[#allocation2 + $0x40] sm:$0x1]
    %v47 = vld [vmem:[#allocation2 + $0x50] sm:$0x1]
    %v48 = vld [vmem:[#allocation2 + $0x60] sm:$0x1]
    %v49 = vld [vmem:[#allocation2 + $0x70] sm:$0x1]
    %v51 = vlaneseq
    %v52 = vshrl.u32 %v51, 7
    %v53 = vsub.s32 0, %v52
    %v54 = vrot.slane %v41, %v53
    %v56 = vmul.f32 %v42, %v54
    %v57 = vmul.f32 %v43, %v54
    %v58 = vmul.f32 %v44, %v54
    %v59 = vmul.f32 %v45, %v54
    %v60 = vmul.f32 %v46, %v54
    %v61 = vmul.f32 %v47, %v54
    %v62 = vmul.f32 %v48, %v54
    %v63 = vmul.f32 %v49, %v54
    %s64 = scalar_lea.vmem [#allocation2], 8
    %v65 = vld [vmem:[%s64] sm:$0x1]
    %v66 = vld [vmem:[%s64 + $0x10] sm:$0x1]
    %v67 = vld [vmem:[%s64 + $0x20] sm:$0x1]
    %v68 = vld [vmem:[%s64 + $0x30] sm:$0x1]
    %v69 = vld [vmem:[%s64 + $0x40] sm:$0x1]
    %v70 = vld [vmem:[%s64 + $0x50] sm:$0x1]
    %v71 = vld [vmem:[%s64 + $0x60] sm:$0x1]
    %v72 = vld [vmem:[%s64 + $0x70] sm:$0x1]
    %v73 = vmul.f32 %v65, %v54
    %v74 = vmul.f32 %v66, %v54
    %v75 = vmul.f32 %v67, %v54
    %v76 = vmul.f32 %v68, %v54
    %v77 = vmul.f32 %v69, %v54
    %v78 = vmul.f32 %v70, %v54
    %v79 = vmul.f32 %v71, %v54
    %v80 = vmul.f32 %v72, %v54
    %v81 = vmul.f32 %v56, %v56
    %v82 = vmul.f32 %v57, %v57
    %v83 = vmul.f32 %v58, %v58
    %v84 = vmul.f32 %v59, %v59
    %v85 = vmul.f32 %v60, %v60
    %v86 = vmul.f32 %v61, %v61
    %v87 = vmul.f32 %v62, %v62
    %v88 = vmul.f32 %v63, %v63
    %v89 = vmul.f32 %v73, %v73
    %v90 = vmul.f32 %v74, %v74
    %v91 = vmul.f32 %v75, %v75
    %v92 = vmul.f32 %v76, %v76
    %v93 = vmul.f32 %v77, %v77
    %v94 = vmul.f32 %v78, %v78
    %v95 = vmul.f32 %v79, %v79
    %v96 = vmul.f32 %v80, %v80
    %v97 = vadd.f32 %v81, %v89
    %v98 = vadd.f32 %v82, %v90
    %v99 = vadd.f32 %v83, %v91
    %v100 = vadd.f32 %v84, %v92
    %v101 = vadd.f32 %v85, %v93
    %v102 = vadd.f32 %v86, %v94
    %v103 = vadd.f32 %v87, %v95
    %v104 = vadd.f32 %v88, %v96
    %v113 = vrot.slane %v98, 7
    %vm114 = vcmask 1041409
    %v115 = vsel %vm114, %v113, %v97
    %v116 = vrot.slane %v99, 6
    %vm117 = vcmask 1042434
    %v118 = vsel %vm117, %v116, %v115
    %v119 = vrot.slane %v100, 5
    %vm120 = vcmask 1043459
    %v121 = vsel %vm120, %v119, %v118
    %v122 = vrot.slane %v101, 4
    %vm123 = vcmask 1044484
    %v124 = vsel %vm123, %v122, %v121
    %v125 = vrot.slane %v102, 3
    %vm126 = vcmask 1045509
    %v127 = vsel %vm126, %v125, %v124
    %v128 = vrot.slane %v103, 2
    %vm129 = vcmask 1046534
    %v130 = vsel %vm129, %v128, %v127
    %v131 = vrot.slane %v104, 1
    %vm132 = vcmask 1047559
    %v133 = vsel %vm132, %v131, %v130
    %135 = vadd.xlane.f32.xlu0 %v133
    %v136 = vpop.xlane.xlu0 %135
    %v137 = vmul.f32 %v136, 0.0078125
    %v138 = vrsqrt.pop %v137
    %v139 = vmul.f32 %v137, %v138
    %v141 = vrot.slane %v138, 1
    %v142 = vrot.slane %v138, 2
    %v143 = vrot.slane %v138, 3
    %v144 = vrot.slane %v138, 4
    %v145 = vrot.slane %v138, 5
    %v146 = vrot.slane %v138, 6
    %v147 = vrot.slane %v138, 7
    %v156 = vmul.f32 %v56, %v138
    %v157 = vmul.f32 %v57, %v141
    %v158 = vmul.f32 %v58, %v142
    %v159 = vmul.f32 %v59, %v143
    %v160 = vmul.f32 %v60, %v144
    %v161 = vmul.f32 %v61, %v145
    %v162 = vmul.f32 %v62, %v146
    %v163 = vmul.f32 %v63, %v147
    %v164 = vmul.f32 %v73, %v138
    %v165 = vmul.f32 %v74, %v141
    %v166 = vmul.f32 %v75, %v142
    %v167 = vmul.f32 %v76, %v143
    %v168 = vmul.f32 %v77, %v144
    %v169 = vmul.f32 %v78, %v145
    %v170 = vmul.f32 %v79, %v146
    %v171 = vmul.f32 %v80, %v147
    %v180 = vrot.slane %v157, 7
    %v181 = vsel %vm114, %v180, %v156
    %v182 = vrot.slane %v158, 6
    %v183 = vsel %vm117, %v182, %v181
    %v184 = vrot.slane %v159, 5
    %v185 = vsel %vm120, %v184, %v183
    %v186 = vrot.slane %v160, 4
    %v187 = vsel %vm123, %v186, %v185
    %v188 = vrot.slane %v161, 3
    %v189 = vsel %vm126, %v188, %v187
    %v190 = vrot.slane %v162, 2
    %v191 = vsel %vm129, %v190, %v189
    %v192 = vrot.slane %v163, 1
    %v193 = vsel %vm132, %v192, %v191
    %v203 = vrot.slane %v165, 7
    %v204 = vsel %vm114, %v203, %v164
    %v205 = vrot.slane %v166, 6
    %v206 = vsel %vm117, %v205, %v204
    %v207 = vrot.slane %v167, 5
    %v208 = vsel %vm120, %v207, %v206
    %v209 = vrot.slane %v168, 4
    %v210 = vsel %vm123, %v209, %v208
    %v211 = vrot.slane %v169, 3
    %v212 = vsel %vm126, %v211, %v210
    %v213 = vrot.slane %v170, 2
    %v214 = vsel %vm129, %v213, %v212
    %v215 = vrot.slane %v171, 1
    %v216 = vsel %vm132, %v215, %v214
    %v218 = vld [vmem:[%s2] sm:$0xf]
    %v219 = vld [vmem:[%s2 + $0x4] sm:$0xf]
    %v220 = vld [vmem:[%s2 + $0x8] sm:$0xf]
    %v221 = vld [vmem:[%s2 + $0xc] sm:$0xf]
    %v222 = vld [vmem:[%s2 + $0x10] sm:$0xf]
    %v223 = vld [vmem:[%s2 + $0x14] sm:$0xf]
    %v224 = vld [vmem:[%s2 + $0x18] sm:$0xf]
    %v225 = vld [vmem:[%s2 + $0x1c] sm:$0xf]
    %v226 = vld [vmem:[%s2 + $0x20] sm:$0xf]
    %v227 = vld [vmem:[%s2 + $0x24] sm:$0xf]
    %v228 = vld [vmem:[%s2 + $0x28] sm:$0xf]
    %v229 = vld [vmem:[%s2 + $0x2c] sm:$0xf]
    %v230 = vld [vmem:[%s2 + $0x30] sm:$0xf]
    %v231 = vld [vmem:[%s2 + $0x34] sm:$0xf]
    %v232 = vld [vmem:[%s2 + $0x38] sm:$0xf]
    %v233 = vld [vmem:[%s2 + $0x3c] sm:$0xf]
    %v234 = vunpack.c.l.bf16 %v218
    %v235 = vunpack.c.l.bf16 %v219
    %v236 = vunpack.c.l.bf16 %v220
    %v237 = vunpack.c.l.bf16 %v221
    %v238 = vunpack.c.l.bf16 %v222
    %v239 = vunpack.c.l.bf16 %v223
    %v240 = vunpack.c.l.bf16 %v224
    %v241 = vunpack.c.l.bf16 %v225
    %v242 = vunpack.c.l.bf16 %v226
    %v243 = vunpack.c.l.bf16 %v227
    %v244 = vunpack.c.l.bf16 %v228
    %v245 = vunpack.c.l.bf16 %v229
    %v246 = vunpack.c.l.bf16 %v230
    %v247 = vunpack.c.l.bf16 %v231
    %v248 = vunpack.c.l.bf16 %v232
    %v249 = vunpack.c.l.bf16 %v233
    %v250 = vld [vmem:[%s3] sm:$0x1]
    %v252 = vlaneseq
    %v253 = vshrl.u32 %v252, 7
    %v254 = vsub.s32 0, %v253
    %v255 = vrot.slane %v250, %v254
    %257 = vmatprep.subr.mxu0 0.0
    %258 = vmatpush1.msra.mxu0 %v234
    %259 = vmatprep.subr.mxu0 0.0
    %260 = vmatpush1.msra.mxu0 %v235
    %261 = vmatprep.subr.mxu0 0.0
    %262 = vmatpush1.msra.mxu0 %v236
    %263 = vmatprep.subr.mxu0 0.0
    %264 = vmatpush1.msra.mxu0 %v237
    %265 = vmatprep.subr.mxu0 0.0
    %266 = vmatpush1.msra.mxu0 %v238
    %267 = vmatprep.subr.mxu0 0.0
    %268 = vmatpush1.msra.mxu0 %v239
    %269 = vmatprep.subr.mxu0 0.0
    %270 = vmatpush1.msra.mxu0 %v240
    %271 = vmatprep.subr.mxu0 0.0
    %272 = vmatpush1.msra.mxu0 %v241
    %273 = vmatprep.subr.mxu0 0.0
    %274 = vmatpush1.msra.mxu0 %v242
    %275 = vmatprep.subr.mxu0 0.0
    %276 = vmatpush1.msra.mxu0 %v243
    %277 = vmatprep.subr.mxu0 0.0
    %278 = vmatpush1.msra.mxu0 %v244
    %279 = vmatprep.subr.mxu0 0.0
    %280 = vmatpush1.msra.mxu0 %v245
    %281 = vmatprep.subr.mxu0 0.0
    %282 = vmatpush1.msra.mxu0 %v246
    %283 = vmatprep.subr.mxu0 0.0
    %284 = vmatpush1.msra.mxu0 %v247
    %285 = vmatprep.subr.mxu0 0.0
    %286 = vmatpush1.msra.mxu0 %v248
    %287 = vmatprep.subr.mxu0 0.0
    %288 = vmatpush1.msra.mxu0 %v249
    %289 = vmatprep.subr.mxu0 0.0
    %290 = vmatpush1.msra.mxu0 0.0
    %291 = vmatprep.subr.mxu0 0.0
    %292 = vmatpush1.msra.mxu0 0.0
    %293 = vmatprep.subr.mxu0 0.0
    %294 = vmatpush1.msra.mxu0 0.0
    %295 = vmatprep.subr.mxu0 0.0
    %296 = vmatpush1.msra.mxu0 0.0
    %297 = vmatprep.subr.mxu0 0.0
    %298 = vmatpush1.msra.mxu0 0.0
    %299 = vmatprep.subr.mxu0 0.0
    %300 = vmatpush1.msra.mxu0 0.0
    %301 = vmatprep.subr.mxu0 0.0
    %302 = vmatpush1.msra.mxu0 0.0
    %303 = vmatprep.subr.mxu0 0.0
    %304 = vmatpush1.msra.mxu0 0.0
    %305 = vmatprep.subr.mxu0 0.0
    %306 = vmatpush1.msra.mxu0 0.0
    %307 = vmatprep.subr.mxu0 0.0
    %308 = vmatpush1.msra.mxu0 0.0
    %309 = vmatprep.subr.mxu0 0.0
    %310 = vmatpush1.msra.mxu0 0.0
    %311 = vmatprep.subr.mxu0 0.0
    %312 = vmatpush1.msra.mxu0 0.0
    %313 = vmatprep.subr.mxu0 0.0
    %314 = vmatpush1.msra.mxu0 0.0
    %315 = vmatprep.subr.mxu0 0.0
    %316 = vmatpush1.msra.mxu0 0.0
    %317 = vmatprep.subr.mxu0 0.0
    %318 = vmatpush1.msra.mxu0 0.0
    %319 = vmatprep.subr.mxu0 0.0
    %320 = vmatpush1.msra.mxu0 0.0
    %321 = vmatprep.mubr.f32.mxu0 0.0
    %322 = vmatmul.mubr.f32.gmra.mrb[0].mxu0 %v193
    %v323 = vpop.f32.mrb[0].mxu0
    %v324 = vadd.f32 %v255, %v323
    %v325 = vpop.f32.mrb[0].mxu0
    %326 = vmatprep.mubr.f32.mxu0 0.0
    %327 = vmatmul.mubr.f32.gmra.mrb[0].mxu0 %v216
    %v328 = vpop.f32.mrb[0].mxu0
    %v329 = vadd.f32 %v255, %v328
    %v330 = vpop.f32.mrb[0].mxu0
    %331 = vdwg.mxu0
    %v332 = vmax.f32 %v324, 0.0
    %v333 = vmax.f32 %v329, 0.0
    %v334 = vld [vmem:[%s4] sm:$0xf]
    %v335 = vld [vmem:[%s4 + $0x4] sm:$0xf]
    %v336 = vld [vmem:[%s4 + $0x8] sm:$0xf]
    %v337 = vld [vmem:[%s4 + $0xc] sm:$0xf]
    %v338 = vunpack.c.l.bf16 %v334
    %v339 = vunpack.c.l.bf16 %v335
    %v340 = vunpack.c.l.bf16 %v336
    %v341 = vunpack.c.l.bf16 %v337
    %v342 = vld [vmem:[%s5] sm:$0x1]
    %v344 = vlaneseq
    %v345 = vshrl.u32 %v344, 7
    %v346 = vsub.s32 0, %v345
    %v347 = vrot.slane %v342, %v346
    %vm349 = vcmask 261120
    %v351 = vsel %vm349, %v332, 0
    %v354 = vsel %vm349, %v333, 0
    %356 = vmatprep.subr.mxu0 0.0
    %357 = vmatpush1.msra.mxu0 %v338
    %358 = vmatprep.subr.mxu0 0.0
    %359 = vmatpush1.msra.mxu0 %v339
    %360 = vmatprep.subr.mxu0 0.0
    %361 = vmatpush1.msra.mxu0 %v340
    %362 = vmatprep.subr.mxu0 0.0
    %363 = vmatpush1.msra.mxu0 %v341
    %364 = vmatprep.subr.mxu0 0.0
    %365 = vmatpush1.msra.mxu0 0.0
    %366 = vmatprep.subr.mxu0 0.0
    %367 = vmatpush1.msra.mxu0 0.0
    %368 = vmatprep.subr.mxu0 0.0
    %369 = vmatpush1.msra.mxu0 0.0
    %370 = vmatprep.subr.mxu0 0.0
    %371 = vmatpush1.msra.mxu0 0.0
    %372 = vmatprep.subr.mxu0 0.0
    %373 = vmatpush1.msra.mxu0 0.0
    %374 = vmatprep.subr.mxu0 0.0
    %375 = vmatpush1.msra.mxu0 0.0
    %376 = vmatprep.subr.mxu0 0.0
    %377 = vmatpush1.msra.mxu0 0.0
    %378 = vmatprep.subr.mxu0 0.0
    %379 = vmatpush1.msra.mxu0 0.0
    %380 = vmatprep.subr.mxu0 0.0
    %381 = vmatpush1.msra.mxu0 0.0
    %382 = vmatprep.subr.mxu0 0.0
    %383 = vmatpush1.msra.mxu0 0.0
    %384 = vmatprep.subr.mxu0 0.0
    %385 = vmatpush1.msra.mxu0 0.0
    %386 = vmatprep.subr.mxu0 0.0
    %387 = vmatpush1.msra.mxu0 0.0
    %388 = vmatprep.subr.mxu0 0.0
    %389 = vmatpush1.msra.mxu0 0.0
    %390 = vmatprep.subr.mxu0 0.0
    %391 = vmatpush1.msra.mxu0 0.0
    %392 = vmatprep.subr.mxu0 0.0
    %393 = vmatpush1.msra.mxu0 0.0
    %394 = vmatprep.subr.mxu0 0.0
    %395 = vmatpush1.msra.mxu0 0.0
    %396 = vmatprep.subr.mxu0 0.0
    %397 = vmatpush1.msra.mxu0 0.0
    %398 = vmatprep.subr.mxu0 0.0
    %399 = vmatpush1.msra.mxu0 0.0
    %400 = vmatprep.subr.mxu0 0.0
    %401 = vmatpush1.msra.mxu0 0.0
    %402 = vmatprep.subr.mxu0 0.0
    %403 = vmatpush1.msra.mxu0 0.0
    %404 = vmatprep.subr.mxu0 0.0
    %405 = vmatpush1.msra.mxu0 0.0
    %406 = vmatprep.subr.mxu0 0.0
    %407 = vmatpush1.msra.mxu0 0.0
    %408 = vmatprep.subr.mxu0 0.0
    %409 = vmatpush1.msra.mxu0 0.0
    %410 = vmatprep.subr.mxu0 0.0
    %411 = vmatpush1.msra.mxu0 0.0
    %412 = vmatprep.subr.mxu0 0.0
    %413 = vmatpush1.msra.mxu0 0.0
    %414 = vmatprep.subr.mxu0 0.0
    %415 = vmatpush1.msra.mxu0 0.0
    %416 = vmatprep.subr.mxu0 0.0
    %417 = vmatpush1.msra.mxu0 0.0
    %418 = vmatprep.subr.mxu0 0.0
    %419 = vmatpush1.msra.mxu0 0.0
    %420 = vmatprep.mubr.f32.mxu0 0.0
    %421 = vmatmul.mubr.f32.gmra.mrb[0].mxu0 %v351
    %v422 = vpop.f32.mrb[0].mxu0
    %v423 = vadd.f32 %v347, %v422
    %v424 = vpop.f32.mrb[0].mxu0
    %425 = vmatprep.mubr.f32.mxu0 0.0
    %426 = vmatmul.mubr.f32.gmra.mrb[0].mxu0 %v354
    %v427 = vpop.f32.mrb[0].mxu0
    %v428 = vadd.f32 %v347, %v427
    %v429 = vpop.f32.mrb[0].mxu0
    %430 = vdwg.mxu0
    %v431 = vmul.f32 %v423, %v139
    %v432 = vmul.f32 %v428, %v139
    %433 = vst [vmem:[#allocation5] sm:$0xff] %v431
    %s434 = scalar_lea.vmem [#allocation5], 8
    %435 = vst [vmem:[%s434] sm:$0xff] %v432
    %v436 = vmul.f32 %v431, %v431
    %v437 = vmul.f32 %v432, %v432
    %v438 = vadd.f32 %v436, %v437
    %v439 = vrcp.pop %v438
    %v440 = vmul.f32 %v438, %v439
    %v441 = vsub.f32 2.0, %v440
    %v442 = vmul.f32 %v439, %v441
    %v443 = vmul.f32 %v431, %v442
    %v445 = vcombine.high %v443, %v443
    %v447 = vunpack.c.l.s4 1966171168
    %v448 = vunpack.c.0.s8 %v447
    %v449 = vlaneseq
    %v450 = vshrl.u32 %v449, 7
    %v451 = vsub.s32 %v448, %v450
    %v452 = vrot.slane %v443, %v451
    %v454 = vunpack.c.l.s4 1966171168
    %v455 = vunpack.c.0.s8 %v454
    %v456 = vlaneseq
    %v457 = vshrl.u32 %v456, 7
    %v458 = vsub.s32 %v455, %v457
    %v459 = vrot.slane %v445, %v458
    %v460 = vcombine.high %v452, %v452
    %v461 = vcombine.high %v459, %v459
    %v463 = vunpack.c.l.s4 1966171168
    %v464 = vunpack.c.0.s8 %v463
    %v465 = vlaneseq
    %v466 = vshrl.u32 %v465, 7
    %v467 = vsub.s32 %v464, %v466
    %v468 = vrot.slane %v452, %v467
    %v470 = vunpack.c.l.s4 1966171168
    %v471 = vunpack.c.0.s8 %v470
    %v472 = vlaneseq
    %v473 = vshrl.u32 %v472, 7
    %v474 = vsub.s32 %v471, %v473
    %v475 = vrot.slane %v459, %v474
    %v477 = vunpack.c.l.s4 1966171168
    %v478 = vunpack.c.0.s8 %v477
    %v479 = vlaneseq
    %v480 = vshrl.u32 %v479, 7
    %v481 = vsub.s32 %v478, %v480
    %v482 = vrot.slane %v460, %v481
    %v484 = vunpack.c.l.s4 1966171168
    %v485 = vunpack.c.0.s8 %v484
    %v486 = vlaneseq
    %v487 = vshrl.u32 %v486, 7
    %v488 = vsub.s32 %v485, %v487
    %v489 = vrot.slane %v461, %v488
    %v490 = vcombine.high %v468, %v468
    %v491 = vcombine.high %v475, %v475
    %v492 = vcombine.high %v482, %v482
    %v493 = vcombine.high %v489, %v489
    %v494 = vmul.f32 %v432, %v442
    %v496 = vcombine.high %v494, %v494
    %v498 = vunpack.c.l.s4 1966171168
    %v499 = vunpack.c.0.s8 %v498
    %v500 = vlaneseq
    %v501 = vshrl.u32 %v500, 7
    %v502 = vsub.s32 %v499, %v501
    %v503 = vrot.slane %v494, %v502
    %v505 = vunpack.c.l.s4 1966171168
    %v506 = vunpack.c.0.s8 %v505
    %v507 = vlaneseq
    %v508 = vshrl.u32 %v507, 7
    %v509 = vsub.s32 %v506, %v508
    %v510 = vrot.slane %v496, %v509
    %v511 = vcombine.high %v503, %v503
    %v512 = vcombine.high %v510, %v510
    %v514 = vunpack.c.l.s4 1966171168
    %v515 = vunpack.c.0.s8 %v514
    %v516 = vlaneseq
    %v517 = vshrl.u32 %v516, 7
    %v518 = vsub.s32 %v515, %v517
    %v519 = vrot.slane %v503, %v518
    %v521 = vunpack.c.l.s4 1966171168
    %v522 = vunpack.c.0.s8 %v521
    %v523 = vlaneseq
    %v524 = vshrl.u32 %v523, 7
    %v525 = vsub.s32 %v522, %v524
    %v526 = vrot.slane %v510, %v525
    %v528 = vunpack.c.l.s4 1966171168
    %v529 = vunpack.c.0.s8 %v528
    %v530 = vlaneseq
    %v531 = vshrl.u32 %v530, 7
    %v532 = vsub.s32 %v529, %v531
    %v533 = vrot.slane %v511, %v532
    %v535 = vunpack.c.l.s4 1966171168
    %v536 = vunpack.c.0.s8 %v535
    %v537 = vlaneseq
    %v538 = vshrl.u32 %v537, 7
    %v539 = vsub.s32 %v536, %v538
    %v540 = vrot.slane %v512, %v539
    %v541 = vcombine.high %v519, %v519
    %v542 = vcombine.high %v526, %v526
    %v543 = vcombine.high %v533, %v533
    %v544 = vcombine.high %v540, %v540
    %v545 = vld [vmem:[#allocation2] sm:$0xff]
    %v546 = vld [vmem:[#allocation2 + $0x10] sm:$0xff]
    %v547 = vld [vmem:[#allocation2 + $0x20] sm:$0xff]
    %v548 = vld [vmem:[#allocation2 + $0x30] sm:$0xff]
    %v549 = vld [vmem:[#allocation2 + $0x40] sm:$0xff]
    %v550 = vld [vmem:[#allocation2 + $0x50] sm:$0xff]
    %v551 = vld [vmem:[#allocation2 + $0x60] sm:$0xff]
    %v552 = vld [vmem:[#allocation2 + $0x70] sm:$0xff]
    %v553 = vlaneseq
    %v554 = vshrl.u32 %v553, 7
    %v555 = vsub.s32 0, %v554
    %v556 = vrot.slane %v468, %v555
    %v557 = vlaneseq
    %v558 = vshrl.u32 %v557, 7
    %v559 = vsub.s32 0, %v558
    %v560 = vrot.slane %v482, %v559
    %v561 = vlaneseq
    %v562 = vshrl.u32 %v561, 7
    %v563 = vsub.s32 0, %v562
    %v564 = vrot.slane %v490, %v563
    %v565 = vlaneseq
    %v566 = vshrl.u32 %v565, 7
    %v567 = vsub.s32 0, %v566
    %v568 = vrot.slane %v492, %v567
    %v569 = vlaneseq
    %v570 = vshrl.u32 %v569, 7
    %v571 = vsub.s32 0, %v570
    %v572 = vrot.slane %v475, %v571
    %v573 = vlaneseq
    %v574 = vshrl.u32 %v573, 7
    %v575 = vsub.s32 0, %v574
    %v576 = vrot.slane %v489, %v575
    %v577 = vlaneseq
    %v578 = vshrl.u32 %v577, 7
    %v579 = vsub.s32 0, %v578
    %v580 = vrot.slane %v491, %v579
    %v581 = vlaneseq
    %v582 = vshrl.u32 %v581, 7
    %v583 = vsub.s32 0, %v582
    %v584 = vrot.slane %v493, %v583
    %v593 = vmul.f32 %v545, %v556
    %v594 = vmul.f32 %v546, %v560
    %v595 = vmul.f32 %v547, %v564
    %v596 = vmul.f32 %v548, %v568
    %v597 = vmul.f32 %v549, %v572
    %v598 = vmul.f32 %v550, %v576
    %v599 = vmul.f32 %v551, %v580
    %v600 = vmul.f32 %v552, %v584
    %v601 = vld [vmem:[%s64] sm:$0xff]
    %v602 = vld [vmem:[%s64 + $0x10] sm:$0xff]
    %v603 = vld [vmem:[%s64 + $0x20] sm:$0xff]
    %v604 = vld [vmem:[%s64 + $0x30] sm:$0xff]
    %v605 = vld [vmem:[%s64 + $0x40] sm:$0xff]
    %v606 = vld [vmem:[%s64 + $0x50] sm:$0xff]
    %v607 = vld [vmem:[%s64 + $0x60] sm:$0xff]
    %v608 = vld [vmem:[%s64 + $0x70] sm:$0xff]
    %v609 = vlaneseq
    %v610 = vshrl.u32 %v609, 7
    %v611 = vsub.s32 0, %v610
    %v612 = vrot.slane %v519, %v611
    %v613 = vlaneseq
    %v614 = vshrl.u32 %v613, 7
    %v615 = vsub.s32 0, %v614
    %v616 = vrot.slane %v533, %v615
    %v617 = vlaneseq
    %v618 = vshrl.u32 %v617, 7
    %v619 = vsub.s32 0, %v618
    %v620 = vrot.slane %v541, %v619
    %v621 = vlaneseq
    %v622 = vshrl.u32 %v621, 7
    %v623 = vsub.s32 0, %v622
    %v624 = vrot.slane %v543, %v623
    %v625 = vlaneseq
    %v626 = vshrl.u32 %v625, 7
    %v627 = vsub.s32 0, %v626
    %v628 = vrot.slane %v526, %v627
    %v629 = vlaneseq
    %v630 = vshrl.u32 %v629, 7
    %v631 = vsub.s32 0, %v630
    %v632 = vrot.slane %v540, %v631
    %v633 = vlaneseq
    %v634 = vshrl.u32 %v633, 7
    %v635 = vsub.s32 0, %v634
    %v636 = vrot.slane %v542, %v635
    %v637 = vlaneseq
    %v638 = vshrl.u32 %v637, 7
    %v639 = vsub.s32 0, %v638
    %v640 = vrot.slane %v544, %v639
    %v649 = vmul.f32 %v601, %v612
    %v650 = vmul.f32 %v602, %v616
    %v651 = vmul.f32 %v603, %v620
    %v652 = vmul.f32 %v604, %v624
    %v653 = vmul.f32 %v605, %v628
    %v654 = vmul.f32 %v606, %v632
    %v655 = vmul.f32 %v607, %v636
    %v656 = vmul.f32 %v608, %v640
    %v657 = vadd.f32 %v593, %v649
    %v658 = vadd.f32 %v594, %v650
    %v659 = vadd.f32 %v595, %v651
    %v660 = vadd.f32 %v596, %v652
    %v661 = vadd.f32 %v597, %v653
    %v662 = vadd.f32 %v598, %v654
    %v663 = vadd.f32 %v599, %v655
    %v664 = vadd.f32 %v600, %v656
    %665 = vst [vmem:[#allocation6] sm:$0xff] %v657
    %666 = vst [vmem:[#allocation6 + $0x10] sm:$0xff] %v658
    %667 = vst [vmem:[#allocation6 + $0x20] sm:$0xff] %v659
    %668 = vst [vmem:[#allocation6 + $0x30] sm:$0xff] %v660
    %669 = vst [vmem:[#allocation6 + $0x40] sm:$0xff] %v661
    %670 = vst [vmem:[#allocation6 + $0x50] sm:$0xff] %v662
    %671 = vst [vmem:[#allocation6 + $0x60] sm:$0xff] %v663
    %672 = vst [vmem:[#allocation6 + $0x70] sm:$0xff] %v664
    %v673 = vld [vmem:[%s64] sm:$0xff]
    %v674 = vld [vmem:[%s64 + $0x10] sm:$0xff]
    %v675 = vld [vmem:[%s64 + $0x20] sm:$0xff]
    %v676 = vld [vmem:[%s64 + $0x30] sm:$0xff]
    %v677 = vld [vmem:[%s64 + $0x40] sm:$0xff]
    %v678 = vld [vmem:[%s64 + $0x50] sm:$0xff]
    %v679 = vld [vmem:[%s64 + $0x60] sm:$0xff]
    %v680 = vld [vmem:[%s64 + $0x70] sm:$0xff]
    %v681 = vmul.f32 %v673, %v556
    %v682 = vmul.f32 %v674, %v560
    %v683 = vmul.f32 %v675, %v564
    %v684 = vmul.f32 %v676, %v568
    %v685 = vmul.f32 %v677, %v572
    %v686 = vmul.f32 %v678, %v576
    %v687 = vmul.f32 %v679, %v580
    %v688 = vmul.f32 %v680, %v584
    %v689 = vld [vmem:[#allocation2] sm:$0xff]
    %v690 = vld [vmem:[#allocation2 + $0x10] sm:$0xff]
    %v691 = vld [vmem:[#allocation2 + $0x20] sm:$0xff]
    %v692 = vld [vmem:[#allocation2 + $0x30] sm:$0xff]
    %v693 = vld [vmem:[#allocation2 + $0x40] sm:$0xff]
    %v694 = vld [vmem:[#allocation2 + $0x50] sm:$0xff]
    %v695 = vld [vmem:[#allocation2 + $0x60] sm:$0xff]
    %v696 = vld [vmem:[#allocation2 + $0x70] sm:$0xff]
    %v697 = vmul.f32 %v689, %v612
    %v698 = vmul.f32 %v690, %v616
    %v699 = vmul.f32 %v691, %v620
    %v700 = vmul.f32 %v692, %v624
    %v701 = vmul.f32 %v693, %v628
    %v702 = vmul.f32 %v694, %v632
    %v703 = vmul.f32 %v695, %v636
    %v704 = vmul.f32 %v696, %v640
    %v705 = vsub.f32 %v681, %v697
    %v706 = vsub.f32 %v682, %v698
    %v707 = vsub.f32 %v683, %v699
    %v708 = vsub.f32 %v684, %v700
    %v709 = vsub.f32 %v685, %v701
    %v710 = vsub.f32 %v686, %v702
    %v711 = vsub.f32 %v687, %v703
    %v712 = vsub.f32 %v688, %v704
    %s713 = scalar_lea.vmem [#allocation6], 8
    %714 = vst [vmem:[%s713] sm:$0xff] %v705
    %715 = vst [vmem:[%s713 + $0x10] sm:$0xff] %v706
    %716 = vst [vmem:[%s713 + $0x20] sm:$0xff] %v707
    %717 = vst [vmem:[%s713 + $0x30] sm:$0xff] %v708
    %718 = vst [vmem:[%s713 + $0x40] sm:$0xff] %v709
    %719 = vst [vmem:[%s713 + $0x50] sm:$0xff] %v710
    %720 = vst [vmem:[%s713 + $0x60] sm:$0xff] %v711
    %721 = vst [vmem:[%s713 + $0x70] sm:$0xff] %v712
    // Predicated region
    $region30: #{tpu_custom_call.1} parent=1 // pred_check
      _
    $region31: #{tpu_custom_call.1} parent=1 // pred_check_branch
      %723 = sbr.rel (0) target = $region33
    $region32: #{tpu_custom_call.1} parent=1 // pred_region
      %s725 = ssub.s32 256, 256
      %726 = vsyncadd [#allocation4], %s725
      %s727 = sshll.u32 [#allocation5], 4
      %s728 = int_to_ptr.vmem [resolvable:$true] %s727
      %733 = dma.vmem_to_hbm [thread:$0]  %s728, 256, %s6, [#allocation4], 128, 128, 8
    $region33: #{tpu_custom_call.1} parent=1 // pred_fallthru
      _
    // Predicated region
    $region34: #{tpu_custom_call.1} parent=1 // pred_check
      _
    $region35: #{tpu_custom_call.1} parent=1 // pred_check_branch
      %735 = sbr.rel (0) target = $region37
    $region36: #{tpu_custom_call.1} parent=1 // pred_region
      %s737 = ssub.s32 2048, 2048
      %738 = vsyncadd [#allocation7], %s737
      %s739 = sshll.u32 [#allocation6], 4
      %s740 = int_to_ptr.vmem [resolvable:$true] %s739
      %745 = dma.vmem_to_hbm [thread:$0]  %s740, 2048, %s7, [#allocation7], 128, 128, 8
    $region37: #{tpu_custom_call.1} parent=1 // pred_fallthru
      _
    // Predicated region
    $region38: #{tpu_custom_call.1} parent=1 // pred_check
      _
    $region39: #{tpu_custom_call.1} parent=1 // pred_check_branch
      %747 = sbr.rel (0) target = $region41
    $region40: #{tpu_custom_call.1} parent=1 // pred_region
      %748 = dma.done [#allocation4], 256
    $region41: #{tpu_custom_call.1} parent=1 // pred_fallthru
      _
    // Predicated region
    $region42: #{tpu_custom_call.1} parent=1 // pred_check
      _
    $region43: #{tpu_custom_call.1} parent=1 // pred_check_branch
      %750 = sbr.rel (0) target = $region45
    $region44: #{tpu_custom_call.1} parent=1 // pred_region
      %751 = dma.done [#allocation7], 2048
    $region45: #{tpu_custom_call.1} parent=1 // pred_fallthru
      _
    %752 = vsyncpa [#allocation3], 1
    %753 = vsyncpa [#allocation4], 1
    %754 = vsyncpa [#allocation7], 1

// kernel: tpu_custom_call.1
$region0: #{tpu_custom_call.1}
  #allocation0 [shape = 'u32[]', space=smem, size = 0x4, offset = 0x4, fixed_abs, tag = 'smem constant byte address 0x4 - core index']
  #allocation1 [shape = 'u32[144,128]{1,0:T(1,128)}', space=vmem, size = 0x12000, scoped, tag = 'internal scratch']
  %s0 = inlined_call_operand.hbm [shape: f32[8,2,8,128], index: 0, kind: input, shape index: {}]
  %s1 = inlined_call_operand.vmem [shape: f32[1,128], index: 1, kind: input, shape index: {}]
  %s2 = inlined_call_operand.vmem [shape: bf16[128,32], index: 2, kind: input, shape index: {}]
  %s3 = inlined_call_operand.vmem [shape: f32[1,32], index: 3, kind: input, shape index: {}]
  %s4 = inlined_call_operand.vmem [shape: bf16[32,128], index: 4, kind: input, shape index: {}]
  %s5 = inlined_call_operand.vmem [shape: f32[1,128], index: 5, kind: input, shape index: {}]
  %s6 = inlined_call_operand.hbm [shape: f32[1,2,8,128], index: 6, kind: output, shape index: {0}]
  %s7 = inlined_call_operand.hbm [shape: f32[8,2,8,128], index: 7, kind: output, shape index: {1}]
  %8 = xla_tuple %s6, %s7
  %s9 = sld [smem:[#allocation0]]
  $region46: #{tpu_custom_call.1} parent=0
    _
  %s11 = ssub.s32 1, %s9
  %s12 = scalar_select 0, %s11, %s9
  $region1: #{tpu_custom_call.1} parent=0
    #allocation2 [shape = 'u8[65536]{0}', space=vmem, size = 0x10000, scoped, tag = 'input window, operand 0, single buffered']
    #allocation3 [shape = 's32[1]{0}', space=sflag, size = 0x4, scoped, tag = 'scoped memory for tpu_custom_call.1']
    #allocation4 [shape = 's32[1]{0}', space=sflag, size = 0x4, scoped, tag = 'scoped memory for tpu_custom_call.1']
    #allocation5 [shape = 'u8[8192]{0}', space=vmem, size = 0x2000, scoped, tag = 'output window, operand 0, single buffered']
    #allocation6 [shape = 'u8[65536]{0}', space=vmem, size = 0x10000, scoped, tag = 'output window, operand 1, single buffered']
    #allocation7 [shape = 's32[1]{0}', space=sflag, size = 0x4, scoped, tag = 'scoped memory for tpu_custom_call.1']
    %13 = vsyncpa [#allocation3], 0
    %14 = vsyncpa [#allocation4], 0
    %15 = vsyncpa [#allocation7], 0
    // Predicated region
    $region2: #{tpu_custom_call.1} parent=1 // pred_check
      _
    $region3: #{tpu_custom_call.1} parent=1 // pred_check_branch
      %17 = sbr.rel (0) target = $region5
    $region4: #{tpu_custom_call.1} parent=1 // pred_region
      %s19 = ssub.s32 2048, 2048
      %20 = vsyncadd [#allocation3], %s19
      %s21 = sshll.u32 [#allocation2], 4
      %s22 = int_to_ptr.vmem [resolvable:$true] %s21
      %27 = dma.hbm_to_vmem [thread:$0]  %s0, 2048, %s22, [#allocation3], 128, 128, 8
    $region5: #{tpu_custom_call.1} parent=1 // pred_fallthru
      _
    // Predicated region
    $region6: #{tpu_custom_call.1} parent=1 // pred_check
      _
    $region7: #{tpu_custom_call.1} parent=1 // pred_check_branch
      %29 = sbr.rel (0) target = $region9
    $region8: #{tpu_custom_call.1} parent=1 // pred_region
      _
    $region9: #{tpu_custom_call.1} parent=1 // pred_fallthru
      _
    // Predicated region
    $region10: #{tpu_custom_call.1} parent=1 // pred_check
      _
    $region11: #{tpu_custom_call.1} parent=1 // pred_check_branch
      %31 = sbr.rel (0) target = $region13
    $region12: #{tpu_custom_call.1} parent=1 // pred_region
      _
    $region13: #{tpu_custom_call.1} parent=1 // pred_fallthru
      _
    // Predicated region
    $region14: #{tpu_custom_call.1} parent=1 // pred_check
      _
    $region15: #{tpu_custom_call.1} parent=1 // pred_check_branch
      %33 = sbr.rel (0) target = $region17
    $region16: #{tpu_custom_call.1} parent=1 // pred_region
      _
    $region17: #{tpu_custom_call.1} parent=1 // pred_fallthru
      _
    // Predicated region
    $region18: #{tpu_custom_call.1} parent=1 // pred_check
      _
    $region19: #{tpu_custom_call.1} parent=1 // pred_check_branch
      %35 = sbr.rel (0) target = $region21
    $region20: #{tpu_custom_call.1} parent=1 // pred_region
      _
    $region21: #{tpu_custom_call.1} parent=1 // pred_fallthru
      _
    // Predicated region
    $region22: #{tpu_custom_call.1} parent=1 // pred_check
      _
    $region23: #{tpu_custom_call.1} parent=1 // pred_check_branch
      %37 = sbr.rel (0) target = $region25
    $region24: #{tpu_custom_call.1} parent=1 // pred_region
      _
    $region25: #{tpu_custom_call.1} parent=1 // pred_fallthru
      _
    // Predicated region
    $region26: #{tpu_custom_call.1} parent=1 // pred_check
      _
    $region27: #{tpu_custom_call.1} parent=1 // pred_check_branch
      %39 = sbr.rel (0) target = $region29
    $region28: #{tpu_custom_call.1} parent=1 // pred_region
      %40 = dma.done [#allocation3], 2048
    $region29: #{tpu_custom_call.1} parent=1 // pred_fallthru
      _
    %v41 = vld [vmem:[%s1] sm:$0x1]
    %v42 = vld [vmem:[#allocation2] sm:$0x1]
    %v43 = vld [vmem:[#allocation2 + $0x10] sm:$0x1]
    %v44 = vld [vmem:[#allocation2 + $0x20] sm:$0x1]
    %v45 = vld [vmem:[#allocation2 + $0x30] sm:$0x1]
    %v46 = vld [vmem:[#allocation2 + $0x40] sm:$0x1]
    %v47 = vld [vmem:[#allocation2 + $0x50] sm:$0x1]
    %v48 = vld [vmem:[#allocation2 + $0x60] sm:$0x1]
    %v49 = vld [vmem:[#allocation2 + $0x70] sm:$0x1]
    %v51 = vlaneseq
    %v52 = vshrl.u32 %v51, 7
    %v53 = vsub.s32 0, %v52
    %v54 = vrot.slane %v41, %v53
    %v56 = vmul.f32 %v42, %v54
    %v57 = vmul.f32 %v43, %v54
    %v58 = vmul.f32 %v44, %v54
    %v59 = vmul.f32 %v45, %v54
    %v60 = vmul.f32 %v46, %v54
    %v61 = vmul.f32 %v47, %v54
    %v62 = vmul.f32 %v48, %v54
    %v63 = vmul.f32 %v49, %v54
    %s64 = scalar_lea.vmem [#allocation2], 8
    %v65 = vld [vmem:[%s64] sm:$0x1]
    %v66 = vld [vmem:[%s64 + $0x10] sm:$0x1]
    %v67 = vld [vmem:[%s64 + $0x20] sm:$0x1]
    %v68 = vld [vmem:[%s64 + $0x30] sm:$0x1]
    %v69 = vld [vmem:[%s64 + $0x40] sm:$0x1]
    %v70 = vld [vmem:[%s64 + $0x50] sm:$0x1]
    %v71 = vld [vmem:[%s64 + $0x60] sm:$0x1]
    %v72 = vld [vmem:[%s64 + $0x70] sm:$0x1]
    %v73 = vmul.f32 %v65, %v54
    %v74 = vmul.f32 %v66, %v54
    %v75 = vmul.f32 %v67, %v54
    %v76 = vmul.f32 %v68, %v54
    %v77 = vmul.f32 %v69, %v54
    %v78 = vmul.f32 %v70, %v54
    %v79 = vmul.f32 %v71, %v54
    %v80 = vmul.f32 %v72, %v54
    %v81 = vmul.f32 %v56, %v56
    %v82 = vmul.f32 %v57, %v57
    %v83 = vmul.f32 %v58, %v58
    %v84 = vmul.f32 %v59, %v59
    %v85 = vmul.f32 %v60, %v60
    %v86 = vmul.f32 %v61, %v61
    %v87 = vmul.f32 %v62, %v62
    %v88 = vmul.f32 %v63, %v63
    %v89 = vmul.f32 %v73, %v73
    %v90 = vmul.f32 %v74, %v74
    %v91 = vmul.f32 %v75, %v75
    %v92 = vmul.f32 %v76, %v76
    %v93 = vmul.f32 %v77, %v77
    %v94 = vmul.f32 %v78, %v78
    %v95 = vmul.f32 %v79, %v79
    %v96 = vmul.f32 %v80, %v80
    %v97 = vadd.f32 %v81, %v89
    %v98 = vadd.f32 %v82, %v90
    %v99 = vadd.f32 %v83, %v91
    %v100 = vadd.f32 %v84, %v92
    %v101 = vadd.f32 %v85, %v93
    %v102 = vadd.f32 %v86, %v94
    %v103 = vadd.f32 %v87, %v95
    %v104 = vadd.f32 %v88, %v96
    %v113 = vrot.slane %v98, 7
    %vm114 = vcmask 1041409
    %v115 = vsel %vm114, %v113, %v97
    %v116 = vrot.slane %v99, 6
    %vm117 = vcmask 1042434
    %v118 = vsel %vm117, %v116, %v115
    %v119 = vrot.slane %v100, 5
    %vm120 = vcmask 1043459
    %v121 = vsel %vm120, %v119, %v118
    %v122 = vrot.slane %v101, 4
    %vm123 = vcmask 1044484
    %v124 = vsel %vm123, %v122, %v121
    %v125 = vrot.slane %v102, 3
    %vm126 = vcmask 1045509
    %v127 = vsel %vm126, %v125, %v124
    %v128 = vrot.slane %v103, 2
    %vm129 = vcmask 1046534
    %v130 = vsel %vm129, %v128, %v127
    %v131 = vrot.slane %v104, 1
    %vm132 = vcmask 1047559
    %v133 = vsel %vm132, %v131, %v130
    %135 = vadd.xlane.f32.xlu0 %v133
    %v136 = vpop.xlane.xlu0 %135
    %v137 = vmul.f32 %v136, 0.0078125
    %v138 = vrsqrt.pop %v137
    %v139 = vmul.f32 %v137, %v138
    %v141 = vrot.slane %v138, 1
    %v142 = vrot.slane %v138, 2
    %v143 = vrot.slane %v138, 3
    %v144 = vrot.slane %v138, 4
    %v145 = vrot.slane %v138, 5
    %v146 = vrot.slane %v138, 6
    %v147 = vrot.slane %v138, 7
    %v156 = vmul.f32 %v56, %v138
    %v157 = vmul.f32 %v57, %v141
    %v158 = vmul.f32 %v58, %v142
    %v159 = vmul.f32 %v59, %v143
    %v160 = vmul.f32 %v60, %v144
    %v161 = vmul.f32 %v61, %v145
    %v162 = vmul.f32 %v62, %v146
    %v163 = vmul.f32 %v63, %v147
    %v164 = vmul.f32 %v73, %v138
    %v165 = vmul.f32 %v74, %v141
    %v166 = vmul.f32 %v75, %v142
    %v167 = vmul.f32 %v76, %v143
    %v168 = vmul.f32 %v77, %v144
    %v169 = vmul.f32 %v78, %v145
    %v170 = vmul.f32 %v79, %v146
    %v171 = vmul.f32 %v80, %v147
    %v180 = vrot.slane %v157, 7
    %v181 = vsel %vm114, %v180, %v156
    %v182 = vrot.slane %v158, 6
    %v183 = vsel %vm117, %v182, %v181
    %v184 = vrot.slane %v159, 5
    %v185 = vsel %vm120, %v184, %v183
    %v186 = vrot.slane %v160, 4
    %v187 = vsel %vm123, %v186, %v185
    %v188 = vrot.slane %v161, 3
    %v189 = vsel %vm126, %v188, %v187
    %v190 = vrot.slane %v162, 2
    %v191 = vsel %vm129, %v190, %v189
    %v192 = vrot.slane %v163, 1
    %v193 = vsel %vm132, %v192, %v191
    %v203 = vrot.slane %v165, 7
    %v204 = vsel %vm114, %v203, %v164
    %v205 = vrot.slane %v166, 6
    %v206 = vsel %vm117, %v205, %v204
    %v207 = vrot.slane %v167, 5
    %v208 = vsel %vm120, %v207, %v206
    %v209 = vrot.slane %v168, 4
    %v210 = vsel %vm123, %v209, %v208
    %v211 = vrot.slane %v169, 3
    %v212 = vsel %vm126, %v211, %v210
    %v213 = vrot.slane %v170, 2
    %v214 = vsel %vm129, %v213, %v212
    %v215 = vrot.slane %v171, 1
    %v216 = vsel %vm132, %v215, %v214
    %v218 = vld [vmem:[%s2] sm:$0xf]
    %v219 = vld [vmem:[%s2 + $0x4] sm:$0xf]
    %v220 = vld [vmem:[%s2 + $0x8] sm:$0xf]
    %v221 = vld [vmem:[%s2 + $0xc] sm:$0xf]
    %v222 = vld [vmem:[%s2 + $0x10] sm:$0xf]
    %v223 = vld [vmem:[%s2 + $0x14] sm:$0xf]
    %v224 = vld [vmem:[%s2 + $0x18] sm:$0xf]
    %v225 = vld [vmem:[%s2 + $0x1c] sm:$0xf]
    %v226 = vld [vmem:[%s2 + $0x20] sm:$0xf]
    %v227 = vld [vmem:[%s2 + $0x24] sm:$0xf]
    %v228 = vld [vmem:[%s2 + $0x28] sm:$0xf]
    %v229 = vld [vmem:[%s2 + $0x2c] sm:$0xf]
    %v230 = vld [vmem:[%s2 + $0x30] sm:$0xf]
    %v231 = vld [vmem:[%s2 + $0x34] sm:$0xf]
    %v232 = vld [vmem:[%s2 + $0x38] sm:$0xf]
    %v233 = vld [vmem:[%s2 + $0x3c] sm:$0xf]
    %v234 = vunpack.c.l.bf16 %v218
    %v235 = vunpack.c.l.bf16 %v219
    %v236 = vunpack.c.l.bf16 %v220
    %v237 = vunpack.c.l.bf16 %v221
    %v238 = vunpack.c.l.bf16 %v222
    %v239 = vunpack.c.l.bf16 %v223
    %v240 = vunpack.c.l.bf16 %v224
    %v241 = vunpack.c.l.bf16 %v225
    %v242 = vunpack.c.l.bf16 %v226
    %v243 = vunpack.c.l.bf16 %v227
    %v244 = vunpack.c.l.bf16 %v228
    %v245 = vunpack.c.l.bf16 %v229
    %v246 = vunpack.c.l.bf16 %v230
    %v247 = vunpack.c.l.bf16 %v231
    %v248 = vunpack.c.l.bf16 %v232
    %v249 = vunpack.c.l.bf16 %v233
    %v250 = vld [vmem:[%s3] sm:$0x1]
    %v252 = vlaneseq
    %v253 = vshrl.u32 %v252, 7
    %v254 = vsub.s32 0, %v253
    %v255 = vrot.slane %v250, %v254
    %257 = vmatprep.subr.mxu0 0.0
    %258 = vmatpush1.msra.mxu0 %v234
    %259 = vmatprep.subr.mxu0 0.0
    %260 = vmatpush1.msra.mxu0 %v235
    %261 = vmatprep.subr.mxu0 0.0
    %262 = vmatpush1.msra.mxu0 %v236
    %263 = vmatprep.subr.mxu0 0.0
    %264 = vmatpush1.msra.mxu0 %v237
    %265 = vmatprep.subr.mxu0 0.0
    %266 = vmatpush1.msra.mxu0 %v238
    %267 = vmatprep.subr.mxu0 0.0
    %268 = vmatpush1.msra.mxu0 %v239
    %269 = vmatprep.subr.mxu0 0.0
    %270 = vmatpush1.msra.mxu0 %v240
    %271 = vmatprep.subr.mxu0 0.0
    %272 = vmatpush1.msra.mxu0 %v241
    %273 = vmatprep.subr.mxu0 0.0
    %274 = vmatpush1.msra.mxu0 %v242
    %275 = vmatprep.subr.mxu0 0.0
    %276 = vmatpush1.msra.mxu0 %v243
    %277 = vmatprep.subr.mxu0 0.0
    %278 = vmatpush1.msra.mxu0 %v244
    %279 = vmatprep.subr.mxu0 0.0
    %280 = vmatpush1.msra.mxu0 %v245
    %281 = vmatprep.subr.mxu0 0.0
    %282 = vmatpush1.msra.mxu0 %v246
    %283 = vmatprep.subr.mxu0 0.0
    %284 = vmatpush1.msra.mxu0 %v247
    %285 = vmatprep.subr.mxu0 0.0
    %286 = vmatpush1.msra.mxu0 %v248
    %287 = vmatprep.subr.mxu0 0.0
    %288 = vmatpush1.msra.mxu0 %v249
    %289 = vmatprep.subr.mxu0 0.0
    %290 = vmatpush1.msra.mxu0 0.0
    %291 = vmatprep.subr.mxu0 0.0
    %292 = vmatpush1.msra.mxu0 0.0
    %293 = vmatprep.subr.mxu0 0.0
    %294 = vmatpush1.msra.mxu0 0.0
    %295 = vmatprep.subr.mxu0 0.0
    %296 = vmatpush1.msra.mxu0 0.0
    %297 = vmatprep.subr.mxu0 0.0
    %298 = vmatpush1.msra.mxu0 0.0
    %299 = vmatprep.subr.mxu0 0.0
    %300 = vmatpush1.msra.mxu0 0.0
    %301 = vmatprep.subr.mxu0 0.0
    %302 = vmatpush1.msra.mxu0 0.0
    %303 = vmatprep.subr.mxu0 0.0
    %304 = vmatpush1.msra.mxu0 0.0
    %305 = vmatprep.subr.mxu0 0.0
    %306 = vmatpush1.msra.mxu0 0.0
    %307 = vmatprep.subr.mxu0 0.0
    %308 = vmatpush1.msra.mxu0 0.0
    %309 = vmatprep.subr.mxu0 0.0
    %310 = vmatpush1.msra.mxu0 0.0
    %311 = vmatprep.subr.mxu0 0.0
    %312 = vmatpush1.msra.mxu0 0.0
    %313 = vmatprep.subr.mxu0 0.0
    %314 = vmatpush1.msra.mxu0 0.0
    %315 = vmatprep.subr.mxu0 0.0
    %316 = vmatpush1.msra.mxu0 0.0
    %317 = vmatprep.subr.mxu0 0.0
    %318 = vmatpush1.msra.mxu0 0.0
    %319 = vmatprep.subr.mxu0 0.0
    %320 = vmatpush1.msra.mxu0 0.0
    %321 = vmatprep.mubr.f32.mxu0 0.0
    %322 = vmatmul.mubr.f32.gmra.mrb[0].mxu0 %v193
    %v323 = vpop.f32.mrb[0].mxu0
    %v324 = vadd.f32 %v255, %v323
    %v325 = vpop.f32.mrb[0].mxu0
    %326 = vmatprep.mubr.f32.mxu0 0.0
    %327 = vmatmul.mubr.f32.gmra.mrb[0].mxu0 %v216
    %v328 = vpop.f32.mrb[0].mxu0
    %v329 = vadd.f32 %v255, %v328
    %v330 = vpop.f32.mrb[0].mxu0
    %331 = vdwg.mxu0
    %v332 = vmax.f32 %v324, 0.0
    %v333 = vmax.f32 %v329, 0.0
    %v334 = vld [vmem:[%s4] sm:$0xf]
    %v335 = vld [vmem:[%s4 + $0x4] sm:$0xf]
    %v336 = vld [vmem:[%s4 + $0x8] sm:$0xf]
    %v337 = vld [vmem:[%s4 + $0xc] sm:$0xf]
    %v338 = vunpack.c.l.bf16 %v334
    %v339 = vunpack.c.l.bf16 %v335
    %v340 = vunpack.c.l.bf16 %v336
    %v341 = vunpack.c.l.bf16 %v337
    %v342 = vld [vmem:[%s5] sm:$0x1]
    %v344 = vlaneseq
    %v345 = vshrl.u32 %v344, 7
    %v346 = vsub.s32 0, %v345
    %v347 = vrot.slane %v342, %v346
    %vm349 = vcmask 261120
    %v351 = vsel %vm349, %v332, 0
    %v354 = vsel %vm349, %v333, 0
    %356 = vmatprep.subr.mxu0 0.0
    %357 = vmatpush1.msra.mxu0 %v338
    %358 = vmatprep.subr.mxu0 0.0
    %359 = vmatpush1.msra.mxu0 %v339
    %360 = vmatprep.subr.mxu0 0.0
    %361 = vmatpush1.msra.mxu0 %v340
    %362 = vmatprep.subr.mxu0 0.0
    %363 = vmatpush1.msra.mxu0 %v341
    %364 = vmatprep.subr.mxu0 0.0
    %365 = vmatpush1.msra.mxu0 0.0
    %366 = vmatprep.subr.mxu0 0.0
    %367 = vmatpush1.msra.mxu0 0.0
    %368 = vmatprep.subr.mxu0 0.0
    %369 = vmatpush1.msra.mxu0 0.0
    %370 = vmatprep.subr.mxu0 0.0
    %371 = vmatpush1.msra.mxu0 0.0
    %372 = vmatprep.subr.mxu0 0.0
    %373 = vmatpush1.msra.mxu0 0.0
    %374 = vmatprep.subr.mxu0 0.0
    %375 = vmatpush1.msra.mxu0 0.0
    %376 = vmatprep.subr.mxu0 0.0
    %377 = vmatpush1.msra.mxu0 0.0
    %378 = vmatprep.subr.mxu0 0.0
    %379 = vmatpush1.msra.mxu0 0.0
    %380 = vmatprep.subr.mxu0 0.0
    %381 = vmatpush1.msra.mxu0 0.0
    %382 = vmatprep.subr.mxu0 0.0
    %383 = vmatpush1.msra.mxu0 0.0
    %384 = vmatprep.subr.mxu0 0.0
    %385 = vmatpush1.msra.mxu0 0.0
    %386 = vmatprep.subr.mxu0 0.0
    %387 = vmatpush1.msra.mxu0 0.0
    %388 = vmatprep.subr.mxu0 0.0
    %389 = vmatpush1.msra.mxu0 0.0
    %390 = vmatprep.subr.mxu0 0.0
    %391 = vmatpush1.msra.mxu0 0.0
    %392 = vmatprep.subr.mxu0 0.0
    %393 = vmatpush1.msra.mxu0 0.0
    %394 = vmatprep.subr.mxu0 0.0
    %395 = vmatpush1.msra.mxu0 0.0
    %396 = vmatprep.subr.mxu0 0.0
    %397 = vmatpush1.msra.mxu0 0.0
    %398 = vmatprep.subr.mxu0 0.0
    %399 = vmatpush1.msra.mxu0 0.0
    %400 = vmatprep.subr.mxu0 0.0
    %401 = vmatpush1.msra.mxu0 0.0
    %402 = vmatprep.subr.mxu0 0.0
    %403 = vmatpush1.msra.mxu0 0.0
    %404 = vmatprep.subr.mxu0 0.0
    %405 = vmatpush1.msra.mxu0 0.0
    %406 = vmatprep.subr.mxu0 0.0
    %407 = vmatpush1.msra.mxu0 0.0
    %408 = vmatprep.subr.mxu0 0.0
    %409 = vmatpush1.msra.mxu0 0.0
    %410 = vmatprep.subr.mxu0 0.0
    %411 = vmatpush1.msra.mxu0 0.0
    %412 = vmatprep.subr.mxu0 0.0
    %413 = vmatpush1.msra.mxu0 0.0
    %414 = vmatprep.subr.mxu0 0.0
    %415 = vmatpush1.msra.mxu0 0.0
    %416 = vmatprep.subr.mxu0 0.0
    %417 = vmatpush1.msra.mxu0 0.0
    %418 = vmatprep.subr.mxu0 0.0
    %419 = vmatpush1.msra.mxu0 0.0
    %420 = vmatprep.mubr.f32.mxu0 0.0
    %421 = vmatmul.mubr.f32.gmra.mrb[0].mxu0 %v351
    %v422 = vpop.f32.mrb[0].mxu0
    %v423 = vadd.f32 %v347, %v422
    %v424 = vpop.f32.mrb[0].mxu0
    %425 = vmatprep.mubr.f32.mxu0 0.0
    %426 = vmatmul.mubr.f32.gmra.mrb[0].mxu0 %v354
    %v427 = vpop.f32.mrb[0].mxu0
    %v428 = vadd.f32 %v347, %v427
    %v429 = vpop.f32.mrb[0].mxu0
    %430 = vdwg.mxu0
    %v431 = vmul.f32 %v423, %v139
    %v432 = vmul.f32 %v428, %v139
    %433 = vst [vmem:[#allocation5] sm:$0xff] %v431
    %s434 = scalar_lea.vmem [#allocation5], 8
    %435 = vst [vmem:[%s434] sm:$0xff] %v432
    %v436 = vmul.f32 %v431, %v431
    %v437 = vmul.f32 %v432, %v432
    %v438 = vadd.f32 %v436, %v437
    %v439 = vrcp.pop %v438
    %v440 = vmul.f32 %v438, %v439
    %v441 = vsub.f32 2.0, %v440
    %v442 = vmul.f32 %v439, %v441
    %v443 = vmul.f32 %v431, %v442
    %v445 = vcombine.high %v443, %v443
    %v447 = vunpack.c.l.s4 1966171168
    %v448 = vunpack.c.0.s8 %v447
    %v449 = vlaneseq
    %v450 = vshrl.u32 %v449, 7
    %v451 = vsub.s32 %v448, %v450
    %v452 = vrot.slane %v443, %v451
    %v454 = vunpack.c.l.s4 1966171168
    %v455 = vunpack.c.0.s8 %v454
    %v456 = vlaneseq
    %v457 = vshrl.u32 %v456, 7
    %v458 = vsub.s32 %v455, %v457
    %v459 = vrot.slane %v445, %v458
    %v460 = vcombine.high %v452, %v452
    %v461 = vcombine.high %v459, %v459
    %v463 = vunpack.c.l.s4 1966171168
    %v464 = vunpack.c.0.s8 %v463
    %v465 = vlaneseq
    %v466 = vshrl.u32 %v465, 7
    %v467 = vsub.s32 %v464, %v466
    %v468 = vrot.slane %v452, %v467
    %v470 = vunpack.c.l.s4 1966171168
    %v471 = vunpack.c.0.s8 %v470
    %v472 = vlaneseq
    %v473 = vshrl.u32 %v472, 7
    %v474 = vsub.s32 %v471, %v473
    %v475 = vrot.slane %v459, %v474
    %v477 = vunpack.c.l.s4 1966171168
    %v478 = vunpack.c.0.s8 %v477
    %v479 = vlaneseq
    %v480 = vshrl.u32 %v479, 7
    %v481 = vsub.s32 %v478, %v480
    %v482 = vrot.slane %v460, %v481
    %v484 = vunpack.c.l.s4 1966171168
    %v485 = vunpack.c.0.s8 %v484
    %v486 = vlaneseq
    %v487 = vshrl.u32 %v486, 7
    %v488 = vsub.s32 %v485, %v487
    %v489 = vrot.slane %v461, %v488
    %v490 = vcombine.high %v468, %v468
    %v491 = vcombine.high %v475, %v475
    %v492 = vcombine.high %v482, %v482
    %v493 = vcombine.high %v489, %v489
    %v494 = vmul.f32 %v432, %v442
    %v496 = vcombine.high %v494, %v494
    %v498 = vunpack.c.l.s4 1966171168
    %v499 = vunpack.c.0.s8 %v498
    %v500 = vlaneseq
    %v501 = vshrl.u32 %v500, 7
    %v502 = vsub.s32 %v499, %v501
    %v503 = vrot.slane %v494, %v502
    %v505 = vunpack.c.l.s4 1966171168
    %v506 = vunpack.c.0.s8 %v505
    %v507 = vlaneseq
    %v508 = vshrl.u32 %v507, 7
    %v509 = vsub.s32 %v506, %v508
    %v510 = vrot.slane %v496, %v509
    %v511 = vcombine.high %v503, %v503
    %v512 = vcombine.high %v510, %v510
    %v514 = vunpack.c.l.s4 1966171168
    %v515 = vunpack.c.0.s8 %v514
    %v516 = vlaneseq
    %v517 = vshrl.u32 %v516, 7
    %v518 = vsub.s32 %v515, %v517
    %v519 = vrot.slane %v503, %v518
    %v521 = vunpack.c.l.s4 1966171168
    %v522 = vunpack.c.0.s8 %v521
    %v523 = vlaneseq
    %v524 = vshrl.u32 %v523, 7
    %v525 = vsub.s32 %v522, %v524
    %v526 = vrot.slane %v510, %v525
    %v528 = vunpack.c.l.s4 1966171168
    %v529 = vunpack.c.0.s8 %v528
    %v530 = vlaneseq
    %v531 = vshrl.u32 %v530, 7
    %v532 = vsub.s32 %v529, %v531
    %v533 = vrot.slane %v511, %v532
    %v535 = vunpack.c.l.s4 1966171168
    %v536 = vunpack.c.0.s8 %v535
    %v537 = vlaneseq
    %v538 = vshrl.u32 %v537, 7
    %v539 = vsub.s32 %v536, %v538
    %v540 = vrot.slane %v512, %v539
    %v541 = vcombine.high %v519, %v519
    %v542 = vcombine.high %v526, %v526
    %v543 = vcombine.high %v533, %v533
    %v544 = vcombine.high %v540, %v540
    %v545 = vld [vmem:[#allocation2] sm:$0xff]
    %v546 = vld [vmem:[#allocation2 + $0x10] sm:$0xff]
    %v547 = vld [vmem:[#allocation2 + $0x20] sm:$0xff]
    %v548 = vld [vmem:[#allocation2 + $0x30] sm:$0xff]
    %v549 = vld [vmem:[#allocation2 + $0x40] sm:$0xff]
    %v550 = vld [vmem:[#allocation2 + $0x50] sm:$0xff]
    %v551 = vld [vmem:[#allocation2 + $0x60] sm:$0xff]
    %v552 = vld [vmem:[#allocation2 + $0x70] sm:$0xff]
    %v553 = vlaneseq
    %v554 = vshrl.u32 %v553, 7
    %v555 = vsub.s32 0, %v554
    %v556 = vrot.slane %v468, %v555
    %v557 = vlaneseq
    %v558 = vshrl.u32 %v557, 7
    %v559 = vsub.s32 0, %v558
    %v560 = vrot.slane %v482, %v559
    %v561 = vlaneseq
    %v562 = vshrl.u32 %v561, 7
    %v563 = vsub.s32 0, %v562
    %v564 = vrot.slane %v490, %v563
    %v565 = vlaneseq
    %v566 = vshrl.u32 %v565, 7
    %v567 = vsub.s32 0, %v566
    %v568 = vrot.slane %v492, %v567
    %v569 = vlaneseq
    %v570 = vshrl.u32 %v569, 7
    %v571 = vsub.s32 0, %v570
    %v572 = vrot.slane %v475, %v571
    %v573 = vlaneseq
    %v574 = vshrl.u32 %v573, 7
    %v575 = vsub.s32 0, %v574
    %v576 = vrot.slane %v489, %v575
    %v577 = vlaneseq
    %v578 = vshrl.u32 %v577, 7
    %v579 = vsub.s32 0, %v578
    %v580 = vrot.slane %v491, %v579
    %v581 = vlaneseq
    %v582 = vshrl.u32 %v581, 7
    %v583 = vsub.s32 0, %v582
    %v584 = vrot.slane %v493, %v583
    %v593 = vmul.f32 %v545, %v556
    %v594 = vmul.f32 %v546, %v560
    %v595 = vmul.f32 %v547, %v564
    %v596 = vmul.f32 %v548, %v568
    %v597 = vmul.f32 %v549, %v572
    %v598 = vmul.f32 %v550, %v576
    %v599 = vmul.f32 %v551, %v580
    %v600 = vmul.f32 %v552, %v584
    %v601 = vld [vmem:[%s64] sm:$0xff]
    %v602 = vld [vmem:[%s64 + $0x10] sm:$0xff]
    %v603 = vld [vmem:[%s64 + $0x20] sm:$0xff]
    %v604 = vld [vmem:[%s64 + $0x30] sm:$0xff]
    %v605 = vld [vmem:[%s64 + $0x40] sm:$0xff]
    %v606 = vld [vmem:[%s64 + $0x50] sm:$0xff]
    %v607 = vld [vmem:[%s64 + $0x60] sm:$0xff]
    %v608 = vld [vmem:[%s64 + $0x70] sm:$0xff]
    %v609 = vlaneseq
    %v610 = vshrl.u32 %v609, 7
    %v611 = vsub.s32 0, %v610
    %v612 = vrot.slane %v519, %v611
    %v613 = vlaneseq
    %v614 = vshrl.u32 %v613, 7
    %v615 = vsub.s32 0, %v614
    %v616 = vrot.slane %v533, %v615
    %v617 = vlaneseq
    %v618 = vshrl.u32 %v617, 7
    %v619 = vsub.s32 0, %v618
    %v620 = vrot.slane %v541, %v619
    %v621 = vlaneseq
    %v622 = vshrl.u32 %v621, 7
    %v623 = vsub.s32 0, %v622
    %v624 = vrot.slane %v543, %v623
    %v625 = vlaneseq
    %v626 = vshrl.u32 %v625, 7
    %v627 = vsub.s32 0, %v626
    %v628 = vrot.slane %v526, %v627
    %v629 = vlaneseq
    %v630 = vshrl.u32 %v629, 7
    %v631 = vsub.s32 0, %v630
    %v632 = vrot.slane %v540, %v631
    %v633 = vlaneseq
    %v634 = vshrl.u32 %v633, 7
    %v635 = vsub.s32 0, %v634
    %v636 = vrot.slane %v542, %v635
    %v637 = vlaneseq
    %v638 = vshrl.u32 %v637, 7
    %v639 = vsub.s32 0, %v638
    %v640 = vrot.slane %v544, %v639
    %v649 = vmul.f32 %v601, %v612
    %v650 = vmul.f32 %v602, %v616
    %v651 = vmul.f32 %v603, %v620
    %v652 = vmul.f32 %v604, %v624
    %v653 = vmul.f32 %v605, %v628
    %v654 = vmul.f32 %v606, %v632
    %v655 = vmul.f32 %v607, %v636
    %v656 = vmul.f32 %v608, %v640
    %v657 = vadd.f32 %v593, %v649
    %v658 = vadd.f32 %v594, %v650
    %v659 = vadd.f32 %v595, %v651
    %v660 = vadd.f32 %v596, %v652
    %v661 = vadd.f32 %v597, %v653
    %v662 = vadd.f32 %v598, %v654
    %v663 = vadd.f32 %v599, %v655
    %v664 = vadd.f32 %v600, %v656
    %665 = vst [vmem:[#allocation6] sm:$0xff] %v657
    %666 = vst [vmem:[#allocation6 + $0x10] sm:$0xff] %v658
    %667 = vst [vmem:[#allocation6 + $0x20] sm:$0xff] %v659
    %668 = vst [vmem:[#allocation6 + $0x30] sm:$0xff] %v660
    %669 = vst [vmem:[#allocation6 + $0x40] sm:$0xff] %v661
    %670 = vst [vmem:[#allocation6 + $0x50] sm:$0xff] %v662
    %671 = vst [vmem:[#allocation6 + $0x60] sm:$0xff] %v663
    %672 = vst [vmem:[#allocation6 + $0x70] sm:$0xff] %v664
    %v673 = vld [vmem:[%s64] sm:$0xff]
    %v674 = vld [vmem:[%s64 + $0x10] sm:$0xff]
    %v675 = vld [vmem:[%s64 + $0x20] sm:$0xff]
    %v676 = vld [vmem:[%s64 + $0x30] sm:$0xff]
    %v677 = vld [vmem:[%s64 + $0x40] sm:$0xff]
    %v678 = vld [vmem:[%s64 + $0x50] sm:$0xff]
    %v679 = vld [vmem:[%s64 + $0x60] sm:$0xff]
    %v680 = vld [vmem:[%s64 + $0x70] sm:$0xff]
    %v681 = vmul.f32 %v673, %v556
    %v682 = vmul.f32 %v674, %v560
    %v683 = vmul.f32 %v675, %v564
    %v684 = vmul.f32 %v676, %v568
    %v685 = vmul.f32 %v677, %v572
    %v686 = vmul.f32 %v678, %v576
    %v687 = vmul.f32 %v679, %v580
    %v688 = vmul.f32 %v680, %v584
    %v689 = vld [vmem:[#allocation2] sm:$0xff]
    %v690 = vld [vmem:[#allocation2 + $0x10] sm:$0xff]
    %v691 = vld [vmem:[#allocation2 + $0x20] sm:$0xff]
    %v692 = vld [vmem:[#allocation2 + $0x30] sm:$0xff]
    %v693 = vld [vmem:[#allocation2 + $0x40] sm:$0xff]
    %v694 = vld [vmem:[#allocation2 + $0x50] sm:$0xff]
    %v695 = vld [vmem:[#allocation2 + $0x60] sm:$0xff]
    %v696 = vld [vmem:[#allocation2 + $0x70] sm:$0xff]
    %v697 = vmul.f32 %v689, %v612
    %v698 = vmul.f32 %v690, %v616
    %v699 = vmul.f32 %v691, %v620
    %v700 = vmul.f32 %v692, %v624
    %v701 = vmul.f32 %v693, %v628
    %v702 = vmul.f32 %v694, %v632
    %v703 = vmul.f32 %v695, %v636
    %v704 = vmul.f32 %v696, %v640
    %v705 = vsub.f32 %v681, %v697
    %v706 = vsub.f32 %v682, %v698
    %v707 = vsub.f32 %v683, %v699
    %v708 = vsub.f32 %v684, %v700
    %v709 = vsub.f32 %v685, %v701
    %v710 = vsub.f32 %v686, %v702
    %v711 = vsub.f32 %v687, %v703
    %v712 = vsub.f32 %v688, %v704
    %s713 = scalar_lea.vmem [#allocation6], 8
    %714 = vst [vmem:[%s713] sm:$0xff] %v705
    %715 = vst [vmem:[%s713 + $0x10] sm:$0xff] %v706
    %716 = vst [vmem:[%s713 + $0x20] sm:$0xff] %v707
    %717 = vst [vmem:[%s713 + $0x30] sm:$0xff] %v708
    %718 = vst [vmem:[%s713 + $0x40] sm:$0xff] %v709
    %719 = vst [vmem:[%s713 + $0x50] sm:$0xff] %v710
    %720 = vst [vmem:[%s713 + $0x60] sm:$0xff] %v711
    %721 = vst [vmem:[%s713 + $0x70] sm:$0xff] %v712
    // Predicated region
    $region30: #{tpu_custom_call.1} parent=1 // pred_check
      _
    $region31: #{tpu_custom_call.1} parent=1 // pred_check_branch
      %723 = sbr.rel (0) target = $region33
    $region32: #{tpu_custom_call.1} parent=1 // pred_region
      %s725 = ssub.s32 256, 256
      %726 = vsyncadd [#allocation4], %s725
      %s727 = sshll.u32 [#allocation5], 4
      %s728 = int_to_ptr.vmem [resolvable:$true] %s727
      %733 = dma.vmem_to_hbm [thread:$0]  %s728, 256, %s6, [#allocation4], 128, 128, 8
    $region33: #{tpu_custom_call.1} parent=1 // pred_fallthru
      _
    // Predicated region
    $region34: #{tpu_custom_call.1} parent=1 // pred_check
      _
    $region35: #{tpu_custom_call.1} parent=1 // pred_check_branch
      %735 = sbr.rel (0) target = $region37
    $region36: #{tpu_custom_call.1} parent=1 // pred_region
      %s737 = ssub.s32 2048, 2048
      %738 = vsyncadd [#allocation7], %s737
      %s739 = sshll.u32 [#allocation6], 4
      %s740 = int_to_ptr.vmem [resolvable:$true] %s739
      %745 = dma.vmem_to_hbm [thread:$0]  %s740, 2048, %s7, [#allocation7], 128, 128, 8
    $region37: #{tpu_custom_call.1} parent=1 // pred_fallthru
      _
    // Predicated region
    $region38: #{tpu_custom_call.1} parent=1 // pred_check
      _
    $region39: #{tpu_custom_call.1} parent=1 // pred_check_branch
      %747 = sbr.rel (0) target = $region41
    $region40: #{tpu_custom_call.1} parent=1 // pred_region
      %748 = dma.done [#allocation4], 256
    $region41: #{tpu_custom_call.1} parent=1 // pred_fallthru
      _
    // Predicated region
    $region42: #{tpu_custom_call.1} parent=1 // pred_check
      _
    $region43: #{tpu_custom_call.1} parent=1 // pred_check_branch
      %750 = sbr.rel (0) target = $region45
    $region44: #{tpu_custom_call.1} parent=1 // pred_region
      %751 = dma.done [#allocation7], 2048
    $region45: #{tpu_custom_call.1} parent=1 // pred_fallthru
      _
    %752 = vsyncpa [#allocation3], 1
    %753 = vsyncpa [#allocation4], 1
    %754 = vsyncpa [#allocation7], 1

</llo_original>
